<compile_context>
chip_gen: v7x
topology: tpu7x:2x2x1
jax: 0.10.0
libtpu: 0.0.40
codegen_flags: <defaults>
</compile_context>

<pallas_src>
import jax
import jax.numpy as jnp
from jax.experimental import pallas as pl
from jax.experimental.pallas import tpu as pltpu


def _round_up(v, m):
    return ((v + m - 1) // m) * m


def deepset_kernel(x_ref,
                   wg1_ref, bg1_ref, wl1_ref,
                   wg2_ref, bg2_ref, wl2_ref,
                   wg3_ref, bg3_ref, wl3_ref,
                   w4_ref, b4_ref, w5_ref, b5_ref,
                   out_ref):
    mm_dtype = wg1_ref.dtype        # matmul operand dtype (bf16 by default)

    def elu(v):
        # PyTorch ELU (alpha=1.0); clamp keeps the discarded branch finite.
        return jnp.where(v > 0.0, v, jnp.exp(jnp.minimum(v, 0.0)) - 1.0)

    def perm_equi2_mean(h3, wg_ref, bg_ref, wl_ref):
        # h3: (TB, N, Din) f32. wg/wl: (Din, Dout); wl is pre-scaled by 1/N,
        # so Lambda(mean_N(h)) == sum_N(h) @ wl.
        tb, n, din = h3.shape
        dout = wg_ref.shape[1]
        h2 = h3.reshape(tb * n, din)                       # layout no-op when N % 8 == 0
        gamma = jnp.dot(h2.astype(mm_dtype), wg_ref[...],
                        preferred_element_type=jnp.float32).reshape(tb, n, dout)
        gamma = gamma + bg_ref[...]                        # (1, Dout) broadcast, f32
        hs = jnp.sum(h3, axis=1)                           # (TB, Din) sublane reduce -> XLU
        lam = jnp.dot(hs.astype(mm_dtype), wl_ref[...],
                      preferred_element_type=jnp.float32)  # (TB, Dout)
        return gamma - lam.reshape(tb, 1, dout)            # broadcast over the set dim

    h = elu(perm_equi2_mean(x_ref[...], wg1_ref, bg1_ref, wl1_ref))
    h = elu(perm_equi2_mean(h, wg2_ref, bg2_ref, wl2_ref))
    h = elu(perm_equi2_mean(h, wg3_ref, bg3_ref, wl3_ref))

    pooled = jnp.mean(h, axis=1)                           # (TB, dp), f32

    y = elu(jnp.dot(pooled.astype(mm_dtype), w4_ref[...],
                    preferred_element_type=jnp.float32) + b4_ref[...])
    out = jnp.dot(y.astype(mm_dtype), w5_ref[...],
                  preferred_element_type=jnp.float32) + b5_ref[...]
    out_ref[...] = out.astype(out_ref.dtype)               # lane-dense (TB, op) slab


def _vmem_capacity_bytes():
    try:
        return int(pltpu.get_tpu_info().vmem_capacity_bytes)
    except Exception:
        return 64 * 1024 * 1024          # conservative (v7x per-TC) fallback


def _pick_batch_block(B, N, target_rows=1024):
    if B <= 8:
        return B                          # single block == full (padded) batch dim
    tb = _round_up(max(8, -(-target_rows // max(N, 1))), 8)   # ~1024 set rows / step
    bp8 = _round_up(B, 8)
    if B >= 16:
        # v7x: keep >= 2 grid steps so ("parallel",) can use both TensorCores.
        half = max(8, (bp8 // 2) // 8 * 8)
        tb = min(tb, half)
    return min(tb, bp8)


def _estimate_vmem_bytes(TB, N, x_dim, dp, op, mm_elem, const_bufs):
    f32 = 4
    x_blk = 2 * TB * N * x_dim * f32                     # double-buffered input block
    out_blk = 2 * TB * op * f32                          # double-buffered output block
    weights = (2 * x_dim * dp + 4 * dp * dp + dp * dp + dp * op) * mm_elem
    biases = (4 * dp + op) * f32
    inter = 4 * TB * N * dp * f32 + 2 * TB * dp * f32    # gamma/h temporaries
    return x_blk + out_blk + const_bufs * (weights + biases) + inter


def deepset_forward(x, params, *, batch_block=None, matmul_dtype=jnp.bfloat16):
    """x: (B, N, x_dim) float32. params: dict of (in,out) weights + (1,out) biases."""
    B, N, x_dim = x.shape
    d_dim = params["w1g"].shape[1]
    o_dim = params["w5"].shape[1]
    dp = _round_up(d_dim, 128)
    op = _round_up(o_dim, 128)

    def pad2(a, r, c):
        return jnp.pad(a, ((0, r - a.shape[0]), (0, c - a.shape[1])))

    inv_n = 1.0 / float(N)
    # Unfused Gamma / Lambda weights, lane-padded; 1/N of the set-mean is folded
    # into the Lambda weights so the kernel uses a plain sum reduce.
    wg1 = pad2(params["w1g"], x_dim, dp).astype(matmul_dtype)
    wl1 = pad2(params["w1l"] * inv_n, x_dim, dp).astype(matmul_dtype)
    wg2 = pad2(params["w2g"], dp, dp).astype(matmul_dtype)
    wl2 = pad2(params["w2l"] * inv_n, dp, dp).astype(matmul_dtype)
    wg3 = pad2(params["w3g"], dp, dp).astype(matmul_dtype)
    wl3 = pad2(params["w3l"] * inv_n, dp, dp).astype(matmul_dtype)
    w4 = pad2(params["w4"], dp, dp).astype(matmul_dtype)
    w5 = pad2(params["w5"], dp, op).astype(matmul_dtype)
    bg1 = pad2(params["b1g"], 1, dp)          # biases stay f32
    bg2 = pad2(params["b2g"], 1, dp)
    bg3 = pad2(params["b3g"], 1, dp)
    b4 = pad2(params["b4"], 1, dp)
    b5 = pad2(params["b5"], 1, op)

    mm_elem = jnp.dtype(matmul_dtype).itemsize
    budget = min(_vmem_capacity_bytes() * 3 // 4, 100 * 1024 * 1024)

    TB = int(batch_block) if batch_block is not None else _pick_batch_block(B, N)
    while TB > 8 and _estimate_vmem_bytes(TB, N, x_dim, dp, op, mm_elem, 1) > budget:
        TB = max(8, _round_up(TB // 2, 8))

    Bp = _round_up(B, TB)
    if Bp != B:
        x = jnp.pad(x, ((0, Bp - B), (0, 0), (0, 0)))

    consts = (wg1, bg1, wl1, wg2, bg2, wl2, wg3, bg3, wl3, w4, b4, w5, b5)

    def run(const_buffer_count):
        def const_spec(arr):
            kwargs = {}
            if const_buffer_count == 1:
                # grid-invariant: DMA once, keep a single VMEM buffer
                kwargs["pipeline_mode"] = pl.Buffered(1)
            nd = arr.ndim
            return pl.BlockSpec(arr.shape, lambda b, _n=nd: (0,) * _n, **kwargs)

        return pl.pallas_call(
            deepset_kernel,
            out_shape=jax.ShapeDtypeStruct((Bp, op), jnp.float32),
            grid=(Bp // TB,),
            in_specs=[pl.BlockSpec((TB, N, x_dim), lambda b: (b, 0, 0))]
                     + [const_spec(a) for a in consts],
            out_specs=pl.BlockSpec((TB, op), lambda b: (b, 0)),
            compiler_params=pltpu.CompilerParams(
                dimension_semantics=("parallel",),
                vmem_limit_bytes=int(budget),
            ),
        )(x, *consts)

    try:
        out = run(1)            # single-buffer the grid-invariant weights/biases
    except Exception:
        out = run(2)            # fall back to default double-buffering

    return out[:B, :o_dim]


def init_params(key, x_dim, d_dim, o_dim):
    """Deterministic init mimicking PyTorch Linear default U(-1/sqrt(in), 1/sqrt(in)).
    Weights are stored transposed as (in, out); biases as (1, out)."""
    params = {}
    layer_dims = [
        ("w1g", x_dim, d_dim, True), ("w1l", x_dim, d_dim, False),
        ("w2g", d_dim, d_dim, True), ("w2l", d_dim, d_dim, False),
        ("w3g", d_dim, d_dim, True), ("w3l", d_dim, d_dim, False),
        ("w4",  d_dim, d_dim, True),
        ("w5",  d_dim, o_dim, True),
    ]
    for name, fan_in, fan_out, has_bias in layer_dims:
        key, kw, kb = jax.random.split(key, 3)
        bound = 1.0 / (fan_in ** 0.5)
        params[name] = jax.random.uniform(
            kw, (fan_in, fan_out), jnp.float32, -bound, bound)
        if has_bias:
            params["b" + name[1:]] = jax.random.uniform(
                kb, (1, fan_out), jnp.float32, -bound, bound)
    return params


def deepset_reference(x, p):
    """Pure-JAX reference mirroring the PyTorch forward (eval mode)."""
    def perm_equi2_mean(h, wg, bg, wl):
        hm = jnp.mean(h, axis=1, keepdims=True)
        return (h @ wg + bg) - (hm @ wl)

    h = jax.nn.elu(perm_equi2_mean(x, p["w1g"], p["b1g"], p["w1l"]))
    h = jax.nn.elu(perm_equi2_mean(h, p["w2g"], p["b2g"], p["w2l"]))
    h = jax.nn.elu(perm_equi2_mean(h, p["w3g"], p["b3g"], p["w3l"]))
    pooled = jnp.mean(h, axis=1)
    y = jax.nn.elu(pooled @ p["w4"] + p["b4"])
    return y @ p["w5"] + p["b5"]


if __name__ == "__main__":
    B, N, X_DIM, D_DIM, O_DIM = 2, 8, 3, 32, 8

    key = jax.random.PRNGKey(0)
    key, kx = jax.random.split(key)
    x = jax.random.normal(kx, (B, N, X_DIM), jnp.float32)
    params = init_params(key, X_DIM, D_DIM, O_DIM)

    ref = deepset_reference(x, params)

    # Exact-arithmetic path (f32 MXU operands): tight tolerance vs reference.
    out_f32 = jax.block_until_ready(
        deepset_forward(x, params, matmul_dtype=jnp.float32))
    assert out_f32.shape == (B, O_DIM)
    assert jnp.allclose(out_f32, ref, atol=1e-4, rtol=1e-4), "f32 mismatch vs reference"

    # Default fast path (bf16 MXU operands, f32 accumulate): looser tolerance.
    out_bf16 = jax.block_until_ready(deepset_forward(x, params))
    assert out_bf16.shape == (B, O_DIM)
    assert jnp.allclose(out_bf16, ref, atol=5e-2, rtol=5e-2), "bf16 mismatch vs reference"

    print("KERNEL_OK")
</pallas_src>

<mosaic_0001>
module attributes {stable_mosaic.version = 11 : i64} {
  func.func @deepset_kernel(%arg0: i32, %arg1: memref<2x8x3xf32, #tpu.memory_space<vmem>>, %arg2: memref<3x128xf32, #tpu.memory_space<vmem>>, %arg3: memref<1x128xf32, #tpu.memory_space<vmem>>, %arg4: memref<3x128xf32, #tpu.memory_space<vmem>>, %arg5: memref<128x128xf32, #tpu.memory_space<vmem>>, %arg6: memref<1x128xf32, #tpu.memory_space<vmem>>, %arg7: memref<128x128xf32, #tpu.memory_space<vmem>>, %arg8: memref<128x128xf32, #tpu.memory_space<vmem>>, %arg9: memref<1x128xf32, #tpu.memory_space<vmem>>, %arg10: memref<128x128xf32, #tpu.memory_space<vmem>>, %arg11: memref<128x128xf32, #tpu.memory_space<vmem>>, %arg12: memref<1x128xf32, #tpu.memory_space<vmem>>, %arg13: memref<128x128xf32, #tpu.memory_space<vmem>>, %arg14: memref<1x128xf32, #tpu.memory_space<vmem>>, %arg15: memref<2x128xf32, #tpu.memory_space<vmem>>) attributes {dimension_semantics = [#tpu.dimension_semantics<parallel>], iteration_bounds = array<i64: 1>, scalar_prefetch = 0 : i64, scratch_operands = 0 : i64, tpu.core_type = #tpu.core_type<tc>, window_params = [{transform_indices = @transform_0, window_bounds = array<i64: 2, 8, 3>}, {pipeline_mode = #tpu.pipeline_mode<synchronous>, transform_indices = @transform_1, window_bounds = array<i64: 3, 128>}, {pipeline_mode = #tpu.pipeline_mode<synchronous>, transform_indices = @transform_2, window_bounds = array<i64: 1, 128>}, {pipeline_mode = #tpu.pipeline_mode<synchronous>, transform_indices = @transform_3, window_bounds = array<i64: 3, 128>}, {pipeline_mode = #tpu.pipeline_mode<synchronous>, transform_indices = @transform_4, window_bounds = array<i64: 128, 128>}, {pipeline_mode = #tpu.pipeline_mode<synchronous>, transform_indices = @transform_5, window_bounds = array<i64: 1, 128>}, {pipeline_mode = #tpu.pipeline_mode<synchronous>, transform_indices = @transform_6, window_bounds = array<i64: 128, 128>}, {pipeline_mode = #tpu.pipeline_mode<synchronous>, transform_indices = @transform_7, window_bounds = array<i64: 128, 128>}, {pipeline_mode = #tpu.pipeline_mode<synchronous>, transform_indices = @transform_8, window_bounds = array<i64: 1, 128>}, {pipeline_mode = #tpu.pipeline_mode<synchronous>, transform_indices = @transform_9, window_bounds = array<i64: 128, 128>}, {pipeline_mode = #tpu.pipeline_mode<synchronous>, transform_indices = @transform_10, window_bounds = array<i64: 128, 128>}, {pipeline_mode = #tpu.pipeline_mode<synchronous>, transform_indices = @transform_11, window_bounds = array<i64: 1, 128>}, {pipeline_mode = #tpu.pipeline_mode<synchronous>, transform_indices = @transform_12, window_bounds = array<i64: 128, 128>}, {pipeline_mode = #tpu.pipeline_mode<synchronous>, transform_indices = @transform_13, window_bounds = array<i64: 1, 128>}, {transform_indices = @transform_14, window_bounds = array<i64: 2, 128>}]} {
    %c0 = arith.constant 0 : index
    %c0_0 = arith.constant 0 : index
    %c0_1 = arith.constant 0 : index
    %0 = vector.load %arg1[%c0, %c0_0, %c0_1] : memref<2x8x3xf32, #tpu.memory_space<vmem>>, vector<2x8x3xf32>
    %1 = vector.shape_cast %0 : vector<2x8x3xf32> to vector<16x3xf32>
    %c0_2 = arith.constant 0 : index
    %c0_3 = arith.constant 0 : index
    %2 = vector.load %arg2[%c0_2, %c0_3] : memref<3x128xf32, #tpu.memory_space<vmem>>, vector<3x128xf32>
    %cst = arith.constant dense<0.000000e+00> : vector<16x128xf32>
    %3 = tpu.matmul %1, %2, %cst {dimension_numbers = #tpu.dot_dimension_numbers<[1], [0], [0], [1], [0, 0, 1, 1], [], []>} : vector<16x3xf32>, vector<3x128xf32>, vector<16x128xf32> -> vector<16x128xf32>
    %4 = vector.shape_cast %3 : vector<16x128xf32> to vector<2x8x128xf32>
    %c0_4 = arith.constant 0 : index
    %c0_5 = arith.constant 0 : index
    %5 = vector.load %arg3[%c0_4, %c0_5] : memref<1x128xf32, #tpu.memory_space<vmem>>, vector<1x128xf32>
    %6 = vector.shape_cast %5 : vector<1x128xf32> to vector<1x1x128xf32>
    %7 = vector.broadcast %6 : vector<1x1x128xf32> to vector<2x8x128xf32>
    %8 = arith.addf %4, %7 : vector<2x8x128xf32>
    %cst_6 = arith.constant dense<0.000000e+00> : vector<2x3xf32>
    %9 = vector.multi_reduction <add>, %0, %cst_6 [1] : vector<2x8x3xf32> to vector<2x3xf32>
    %c0_7 = arith.constant 0 : index
    %c0_8 = arith.constant 0 : index
    %10 = vector.load %arg4[%c0_7, %c0_8] : memref<3x128xf32, #tpu.memory_space<vmem>>, vector<3x128xf32>
    %cst_9 = arith.constant dense<0.000000e+00> : vector<2x128xf32>
    %11 = tpu.matmul %9, %10, %cst_9 {dimension_numbers = #tpu.dot_dimension_numbers<[1], [0], [0], [1], [0, 0, 1, 1], [], []>} : vector<2x3xf32>, vector<3x128xf32>, vector<2x128xf32> -> vector<2x128xf32>
    %12 = vector.shape_cast %11 : vector<2x128xf32> to vector<2x1x128xf32>
    %13 = vector.broadcast %12 : vector<2x1x128xf32> to vector<2x8x128xf32>
    %14 = arith.subf %8, %13 : vector<2x8x128xf32>
    %cst_10 = arith.constant 0.000000e+00 : f32
    %15 = vector.broadcast %cst_10 : f32 to vector<2x8x128xf32>
    %16 = arith.cmpf ogt, %14, %15 : vector<2x8x128xf32>
    %cst_11 = arith.constant 0.000000e+00 : f32
    %17 = vector.broadcast %cst_11 : f32 to vector<2x8x128xf32>
    %18 = arith.minimumf %14, %17 : vector<2x8x128xf32>
    %19 = math.exp %18 : vector<2x8x128xf32>
    %cst_12 = arith.constant 1.000000e+00 : f32
    %20 = vector.broadcast %cst_12 : f32 to vector<2x8x128xf32>
    %21 = arith.subf %19, %20 : vector<2x8x128xf32>
    %22 = arith.select %16, %14, %21 : vector<2x8x128xi1>, vector<2x8x128xf32>
    %23 = vector.shape_cast %22 : vector<2x8x128xf32> to vector<16x128xf32>
    %c0_13 = arith.constant 0 : index
    %c0_14 = arith.constant 0 : index
    %24 = vector.load %arg5[%c0_13, %c0_14] : memref<128x128xf32, #tpu.memory_space<vmem>>, vector<128x128xf32>
    %cst_15 = arith.constant dense<0.000000e+00> : vector<16x128xf32>
    %25 = tpu.matmul %23, %24, %cst_15 {dimension_numbers = #tpu.dot_dimension_numbers<[1], [0], [0], [1], [0, 0, 1, 1], [], []>} : vector<16x128xf32>, vector<128x128xf32>, vector<16x128xf32> -> vector<16x128xf32>
    %26 = vector.shape_cast %25 : vector<16x128xf32> to vector<2x8x128xf32>
    %c0_16 = arith.constant 0 : index
    %c0_17 = arith.constant 0 : index
    %27 = vector.load %arg6[%c0_16, %c0_17] : memref<1x128xf32, #tpu.memory_space<vmem>>, vector<1x128xf32>
    %28 = vector.shape_cast %27 : vector<1x128xf32> to vector<1x1x128xf32>
    %29 = vector.broadcast %28 : vector<1x1x128xf32> to vector<2x8x128xf32>
    %30 = arith.addf %26, %29 : vector<2x8x128xf32>
    %cst_18 = arith.constant dense<0.000000e+00> : vector<2x128xf32>
    %31 = vector.multi_reduction <add>, %22, %cst_18 [1] : vector<2x8x128xf32> to vector<2x128xf32>
    %c0_19 = arith.constant 0 : index
    %c0_20 = arith.constant 0 : index
    %32 = vector.load %arg7[%c0_19, %c0_20] : memref<128x128xf32, #tpu.memory_space<vmem>>, vector<128x128xf32>
    %cst_21 = arith.constant dense<0.000000e+00> : vector<2x128xf32>
    %33 = tpu.matmul %31, %32, %cst_21 {dimension_numbers = #tpu.dot_dimension_numbers<[1], [0], [0], [1], [0, 0, 1, 1], [], []>} : vector<2x128xf32>, vector<128x128xf32>, vector<2x128xf32> -> vector<2x128xf32>
    %34 = vector.shape_cast %33 : vector<2x128xf32> to vector<2x1x128xf32>
    %35 = vector.broadcast %34 : vector<2x1x128xf32> to vector<2x8x128xf32>
    %36 = arith.subf %30, %35 : vector<2x8x128xf32>
    %cst_22 = arith.constant 0.000000e+00 : f32
    %37 = vector.broadcast %cst_22 : f32 to vector<2x8x128xf32>
    %38 = arith.cmpf ogt, %36, %37 : vector<2x8x128xf32>
    %cst_23 = arith.constant 0.000000e+00 : f32
    %39 = vector.broadcast %cst_23 : f32 to vector<2x8x128xf32>
    %40 = arith.minimumf %36, %39 : vector<2x8x128xf32>
    %41 = math.exp %40 : vector<2x8x128xf32>
    %cst_24 = arith.constant 1.000000e+00 : f32
    %42 = vector.broadcast %cst_24 : f32 to vector<2x8x128xf32>
    %43 = arith.subf %41, %42 : vector<2x8x128xf32>
    %44 = arith.select %38, %36, %43 : vector<2x8x128xi1>, vector<2x8x128xf32>
    %45 = vector.shape_cast %44 : vector<2x8x128xf32> to vector<16x128xf32>
    %c0_25 = arith.constant 0 : index
    %c0_26 = arith.constant 0 : index
    %46 = vector.load %arg8[%c0_25, %c0_26] : memref<128x128xf32, #tpu.memory_space<vmem>>, vector<128x128xf32>
    %cst_27 = arith.constant dense<0.000000e+00> : vector<16x128xf32>
    %47 = tpu.matmul %45, %46, %cst_27 {dimension_numbers = #tpu.dot_dimension_numbers<[1], [0], [0], [1], [0, 0, 1, 1], [], []>} : vector<16x128xf32>, vector<128x128xf32>, vector<16x128xf32> -> vector<16x128xf32>
    %48 = vector.shape_cast %47 : vector<16x128xf32> to vector<2x8x128xf32>
    %c0_28 = arith.constant 0 : index
    %c0_29 = arith.constant 0 : index
    %49 = vector.load %arg9[%c0_28, %c0_29] : memref<1x128xf32, #tpu.memory_space<vmem>>, vector<1x128xf32>
    %50 = vector.shape_cast %49 : vector<1x128xf32> to vector<1x1x128xf32>
    %51 = vector.broadcast %50 : vector<1x1x128xf32> to vector<2x8x128xf32>
    %52 = arith.addf %48, %51 : vector<2x8x128xf32>
    %cst_30 = arith.constant dense<0.000000e+00> : vector<2x128xf32>
    %53 = vector.multi_reduction <add>, %44, %cst_30 [1] : vector<2x8x128xf32> to vector<2x128xf32>
    %c0_31 = arith.constant 0 : index
    %c0_32 = arith.constant 0 : index
    %54 = vector.load %arg10[%c0_31, %c0_32] : memref<128x128xf32, #tpu.memory_space<vmem>>, vector<128x128xf32>
    %cst_33 = arith.constant dense<0.000000e+00> : vector<2x128xf32>
    %55 = tpu.matmul %53, %54, %cst_33 {dimension_numbers = #tpu.dot_dimension_numbers<[1], [0], [0], [1], [0, 0, 1, 1], [], []>} : vector<2x128xf32>, vector<128x128xf32>, vector<2x128xf32> -> vector<2x128xf32>
    %56 = vector.shape_cast %55 : vector<2x128xf32> to vector<2x1x128xf32>
    %57 = vector.broadcast %56 : vector<2x1x128xf32> to vector<2x8x128xf32>
    %58 = arith.subf %52, %57 : vector<2x8x128xf32>
    %cst_34 = arith.constant 0.000000e+00 : f32
    %59 = vector.broadcast %cst_34 : f32 to vector<2x8x128xf32>
    %60 = arith.cmpf ogt, %58, %59 : vector<2x8x128xf32>
    %cst_35 = arith.constant 0.000000e+00 : f32
    %61 = vector.broadcast %cst_35 : f32 to vector<2x8x128xf32>
    %62 = arith.minimumf %58, %61 : vector<2x8x128xf32>
    %63 = math.exp %62 : vector<2x8x128xf32>
    %cst_36 = arith.constant 1.000000e+00 : f32
    %64 = vector.broadcast %cst_36 : f32 to vector<2x8x128xf32>
    %65 = arith.subf %63, %64 : vector<2x8x128xf32>
    %66 = arith.select %60, %58, %65 : vector<2x8x128xi1>, vector<2x8x128xf32>
    %cst_37 = arith.constant dense<0.000000e+00> : vector<2x128xf32>
    %67 = vector.multi_reduction <add>, %66, %cst_37 [1] : vector<2x8x128xf32> to vector<2x128xf32>
    %cst_38 = arith.constant 8.000000e+00 : f32
    %68 = vector.broadcast %cst_38 : f32 to vector<2x128xf32>
    %69 = arith.divf %67, %68 : vector<2x128xf32>
    %c0_39 = arith.constant 0 : index
    %c0_40 = arith.constant 0 : index
    %70 = vector.load %arg11[%c0_39, %c0_40] : memref<128x128xf32, #tpu.memory_space<vmem>>, vector<128x128xf32>
    %cst_41 = arith.constant dense<0.000000e+00> : vector<2x128xf32>
    %71 = tpu.matmul %69, %70, %cst_41 {dimension_numbers = #tpu.dot_dimension_numbers<[1], [0], [0], [1], [0, 0, 1, 1], [], []>} : vector<2x128xf32>, vector<128x128xf32>, vector<2x128xf32> -> vector<2x128xf32>
    %c0_42 = arith.constant 0 : index
    %c0_43 = arith.constant 0 : index
    %72 = vector.load %arg12[%c0_42, %c0_43] : memref<1x128xf32, #tpu.memory_space<vmem>>, vector<1x128xf32>
    %73 = vector.broadcast %72 : vector<1x128xf32> to vector<2x128xf32>
    %74 = arith.addf %71, %73 : vector<2x128xf32>
    %cst_44 = arith.constant 0.000000e+00 : f32
    %75 = vector.broadcast %cst_44 : f32 to vector<2x128xf32>
    %76 = arith.cmpf ogt, %74, %75 : vector<2x128xf32>
    %cst_45 = arith.constant 0.000000e+00 : f32
    %77 = vector.broadcast %cst_45 : f32 to vector<2x128xf32>
    %78 = arith.minimumf %74, %77 : vector<2x128xf32>
    %79 = math.exp %78 : vector<2x128xf32>
    %cst_46 = arith.constant 1.000000e+00 : f32
    %80 = vector.broadcast %cst_46 : f32 to vector<2x128xf32>
    %81 = arith.subf %79, %80 : vector<2x128xf32>
    %82 = arith.select %76, %74, %81 : vector<2x128xi1>, vector<2x128xf32>
    %c0_47 = arith.constant 0 : index
    %c0_48 = arith.constant 0 : index
    %83 = vector.load %arg13[%c0_47, %c0_48] : memref<128x128xf32, #tpu.memory_space<vmem>>, vector<128x128xf32>
    %cst_49 = arith.constant dense<0.000000e+00> : vector<2x128xf32>
    %84 = tpu.matmul %82, %83, %cst_49 {dimension_numbers = #tpu.dot_dimension_numbers<[1], [0], [0], [1], [0, 0, 1, 1], [], []>} : vector<2x128xf32>, vector<128x128xf32>, vector<2x128xf32> -> vector<2x128xf32>
    %c0_50 = arith.constant 0 : index
    %c0_51 = arith.constant 0 : index
    %85 = vector.load %arg14[%c0_50, %c0_51] : memref<1x128xf32, #tpu.memory_space<vmem>>, vector<1x128xf32>
    %86 = vector.broadcast %85 : vector<1x128xf32> to vector<2x128xf32>
    %87 = arith.addf %84, %86 : vector<2x128xf32>
    %c0_52 = arith.constant 0 : index
    %c0_53 = arith.constant 0 : index
    %88 = vector.load %arg15[%c0_52, %c0_53] : memref<2x128xf32, #tpu.memory_space<vmem>>, vector<2x128xf32>
    tpu.vector_store %arg15[%c0_52, %c0_53], %87 {strides = array<i32>} : memref<2x128xf32, #tpu.memory_space<vmem>>, vector<2x128xf32>,
    return
  }
  func.func @transform_0(%arg0: i32) -> (i32, i32, i32) {
    %c0_i32 = arith.constant 0 : i32
    %c0_i32_0 = arith.constant 0 : i32
    %c0_i32_1 = arith.constant 0 : i32
    return %arg0, %c0_i32, %c0_i32_0 : i32, i32, i32
  }
  func.func @transform_1(%arg0: i32) -> (i32, i32) {
    %c0_i32 = arith.constant 0 : i32
    %c0_i32_0 = arith.constant 0 : i32
    %c0_i32_1 = arith.constant 0 : i32
    return %c0_i32, %c0_i32_0 : i32, i32
  }
  func.func @transform_2(%arg0: i32) -> (i32, i32) {
    %c0_i32 = arith.constant 0 : i32
    %c0_i32_0 = arith.constant 0 : i32
    %c0_i32_1 = arith.constant 0 : i32
    return %c0_i32, %c0_i32_0 : i32, i32
  }
  func.func @transform_3(%arg0: i32) -> (i32, i32) {
    %c0_i32 = arith.constant 0 : i32
    %c0_i32_0 = arith.constant 0 : i32
    %c0_i32_1 = arith.constant 0 : i32
    return %c0_i32, %c0_i32_0 : i32, i32
  }
  func.func @transform_4(%arg0: i32) -> (i32, i32) {
    %c0_i32 = arith.constant 0 : i32
    %c0_i32_0 = arith.constant 0 : i32
    %c0_i32_1 = arith.constant 0 : i32
    return %c0_i32, %c0_i32_0 : i32, i32
  }
  func.func @transform_5(%arg0: i32) -> (i32, i32) {
    %c0_i32 = arith.constant 0 : i32
    %c0_i32_0 = arith.constant 0 : i32
    %c0_i32_1 = arith.constant 0 : i32
    return %c0_i32, %c0_i32_0 : i32, i32
  }
  func.func @transform_6(%arg0: i32) -> (i32, i32) {
    %c0_i32 = arith.constant 0 : i32
    %c0_i32_0 = arith.constant 0 : i32
    %c0_i32_1 = arith.constant 0 : i32
    return %c0_i32, %c0_i32_0 : i32, i32
  }
  func.func @transform_7(%arg0: i32) -> (i32, i32) {
    %c0_i32 = arith.constant 0 : i32
    %c0_i32_0 = arith.constant 0 : i32
    %c0_i32_1 = arith.constant 0 : i32
    return %c0_i32, %c0_i32_0 : i32, i32
  }
  func.func @transform_8(%arg0: i32) -> (i32, i32) {
    %c0_i32 = arith.constant 0 : i32
    %c0_i32_0 = arith.constant 0 : i32
    %c0_i32_1 = arith.constant 0 : i32
    return %c0_i32, %c0_i32_0 : i32, i32
  }
  func.func @transform_9(%arg0: i32) -> (i32, i32) {
    %c0_i32 = arith.constant 0 : i32
    %c0_i32_0 = arith.constant 0 : i32
    %c0_i32_1 = arith.constant 0 : i32
    return %c0_i32, %c0_i32_0 : i32, i32
  }
  func.func @transform_10(%arg0: i32) -> (i32, i32) {
    %c0_i32 = arith.constant 0 : i32
    %c0_i32_0 = arith.constant 0 : i32
    %c0_i32_1 = arith.constant 0 : i32
    return %c0_i32, %c0_i32_0 : i32, i32
  }
  func.func @transform_11(%arg0: i32) -> (i32, i32) {
    %c0_i32 = arith.constant 0 : i32
    %c0_i32_0 = arith.constant 0 : i32
    %c0_i32_1 = arith.constant 0 : i32
    return %c0_i32, %c0_i32_0 : i32, i32
  }
  func.func @transform_12(%arg0: i32) -> (i32, i32) {
    %c0_i32 = arith.constant 0 : i32
    %c0_i32_0 = arith.constant 0 : i32
    %c0_i32_1 = arith.constant 0 : i32
    return %c0_i32, %c0_i32_0 : i32, i32
  }
  func.func @transform_13(%arg0: i32) -> (i32, i32) {
    %c0_i32 = arith.constant 0 : i32
    %c0_i32_0 = arith.constant 0 : i32
    %c0_i32_1 = arith.constant 0 : i32
    return %c0_i32, %c0_i32_0 : i32, i32
  }
  func.func @transform_14(%arg0: i32) -> (i32, i32) {
    %c0_i32 = arith.constant 0 : i32
    %c0_i32_0 = arith.constant 0 : i32
    return %arg0, %c0_i32 : i32, i32
  }
}

module attributes {stable_mosaic.version = 11 : i64} {
  func.func @deepset_kernel(%arg0: i32, %arg1: memref<2x8x3xf32, #tpu.memory_space<vmem>>, %arg2: memref<3x128xf32, #tpu.memory_space<vmem>>, %arg3: memref<1x128xf32, #tpu.memory_space<vmem>>, %arg4: memref<3x128xf32, #tpu.memory_space<vmem>>, %arg5: memref<128x128xf32, #tpu.memory_space<vmem>>, %arg6: memref<1x128xf32, #tpu.memory_space<vmem>>, %arg7: memref<128x128xf32, #tpu.memory_space<vmem>>, %arg8: memref<128x128xf32, #tpu.memory_space<vmem>>, %arg9: memref<1x128xf32, #tpu.memory_space<vmem>>, %arg10: memref<128x128xf32, #tpu.memory_space<vmem>>, %arg11: memref<128x128xf32, #tpu.memory_space<vmem>>, %arg12: memref<1x128xf32, #tpu.memory_space<vmem>>, %arg13: memref<128x128xf32, #tpu.memory_space<vmem>>, %arg14: memref<1x128xf32, #tpu.memory_space<vmem>>, %arg15: memref<2x128xf32, #tpu.memory_space<vmem>>) attributes {dimension_semantics = [#tpu.dimension_semantics<parallel>], iteration_bounds = array<i64: 1>, scalar_prefetch = 0 : i64, scratch_operands = 0 : i64, tpu.core_type = #tpu.core_type<tc>, window_params = [{transform_indices = @transform_0, window_bounds = array<i64: 2, 8, 3>}, {pipeline_mode = #tpu.pipeline_mode<synchronous>, transform_indices = @transform_1, window_bounds = array<i64: 3, 128>}, {pipeline_mode = #tpu.pipeline_mode<synchronous>, transform_indices = @transform_2, window_bounds = array<i64: 1, 128>}, {pipeline_mode = #tpu.pipeline_mode<synchronous>, transform_indices = @transform_3, window_bounds = array<i64: 3, 128>}, {pipeline_mode = #tpu.pipeline_mode<synchronous>, transform_indices = @transform_4, window_bounds = array<i64: 128, 128>}, {pipeline_mode = #tpu.pipeline_mode<synchronous>, transform_indices = @transform_5, window_bounds = array<i64: 1, 128>}, {pipeline_mode = #tpu.pipeline_mode<synchronous>, transform_indices = @transform_6, window_bounds = array<i64: 128, 128>}, {pipeline_mode = #tpu.pipeline_mode<synchronous>, transform_indices = @transform_7, window_bounds = array<i64: 128, 128>}, {pipeline_mode = #tpu.pipeline_mode<synchronous>, transform_indices = @transform_8, window_bounds = array<i64: 1, 128>}, {pipeline_mode = #tpu.pipeline_mode<synchronous>, transform_indices = @transform_9, window_bounds = array<i64: 128, 128>}, {pipeline_mode = #tpu.pipeline_mode<synchronous>, transform_indices = @transform_10, window_bounds = array<i64: 128, 128>}, {pipeline_mode = #tpu.pipeline_mode<synchronous>, transform_indices = @transform_11, window_bounds = array<i64: 1, 128>}, {pipeline_mode = #tpu.pipeline_mode<synchronous>, transform_indices = @transform_12, window_bounds = array<i64: 128, 128>}, {pipeline_mode = #tpu.pipeline_mode<synchronous>, transform_indices = @transform_13, window_bounds = array<i64: 1, 128>}, {transform_indices = @transform_14, window_bounds = array<i64: 2, 128>}]} {
    %c0 = arith.constant 0 : index
    %c0_0 = arith.constant 0 : index
    %c0_1 = arith.constant 0 : index
    %0 = vector.load %arg1[%c0, %c0_0, %c0_1] : memref<2x8x3xf32, #tpu.memory_space<vmem>>, vector<2x8x3xf32>
    %1 = vector.shape_cast %0 : vector<2x8x3xf32> to vector<16x3xf32>
    %c0_2 = arith.constant 0 : index
    %c0_3 = arith.constant 0 : index
    %2 = vector.load %arg2[%c0_2, %c0_3] : memref<3x128xf32, #tpu.memory_space<vmem>>, vector<3x128xf32>
    %cst = arith.constant dense<0.000000e+00> : vector<16x128xf32>
    %3 = tpu.matmul %1, %2, %cst {dimension_numbers = #tpu.dot_dimension_numbers<[1], [0], [0], [1], [0, 0, 1, 1], [], []>} : vector<16x3xf32>, vector<3x128xf32>, vector<16x128xf32> -> vector<16x128xf32>
    %4 = vector.shape_cast %3 : vector<16x128xf32> to vector<2x8x128xf32>
    %c0_4 = arith.constant 0 : index
    %c0_5 = arith.constant 0 : index
    %5 = vector.load %arg3[%c0_4, %c0_5] : memref<1x128xf32, #tpu.memory_space<vmem>>, vector<1x128xf32>
    %6 = vector.shape_cast %5 : vector<1x128xf32> to vector<1x1x128xf32>
    %7 = vector.broadcast %6 : vector<1x1x128xf32> to vector<2x8x128xf32>
    %8 = arith.addf %4, %7 : vector<2x8x128xf32>
    %cst_6 = arith.constant dense<0.000000e+00> : vector<2x3xf32>
    %9 = vector.multi_reduction <add>, %0, %cst_6 [1] : vector<2x8x3xf32> to vector<2x3xf32>
    %c0_7 = arith.constant 0 : index
    %c0_8 = arith.constant 0 : index
    %10 = vector.load %arg4[%c0_7, %c0_8] : memref<3x128xf32, #tpu.memory_space<vmem>>, vector<3x128xf32>
    %cst_9 = arith.constant dense<0.000000e+00> : vector<2x128xf32>
    %11 = tpu.matmul %9, %10, %cst_9 {dimension_numbers = #tpu.dot_dimension_numbers<[1], [0], [0], [1], [0, 0, 1, 1], [], []>} : vector<2x3xf32>, vector<3x128xf32>, vector<2x128xf32> -> vector<2x128xf32>
    %12 = vector.shape_cast %11 : vector<2x128xf32> to vector<2x1x128xf32>
    %13 = vector.broadcast %12 : vector<2x1x128xf32> to vector<2x8x128xf32>
    %14 = arith.subf %8, %13 : vector<2x8x128xf32>
    %cst_10 = arith.constant 0.000000e+00 : f32
    %15 = vector.broadcast %cst_10 : f32 to vector<2x8x128xf32>
    %16 = arith.cmpf ogt, %14, %15 : vector<2x8x128xf32>
    %cst_11 = arith.constant 0.000000e+00 : f32
    %17 = vector.broadcast %cst_11 : f32 to vector<2x8x128xf32>
    %18 = arith.minimumf %14, %17 : vector<2x8x128xf32>
    %19 = math.exp %18 : vector<2x8x128xf32>
    %cst_12 = arith.constant 1.000000e+00 : f32
    %20 = vector.broadcast %cst_12 : f32 to vector<2x8x128xf32>
    %21 = arith.subf %19, %20 : vector<2x8x128xf32>
    %22 = arith.select %16, %14, %21 : vector<2x8x128xi1>, vector<2x8x128xf32>
    %23 = vector.shape_cast %22 : vector<2x8x128xf32> to vector<16x128xf32>
    %c0_13 = arith.constant 0 : index
    %c0_14 = arith.constant 0 : index
    %24 = vector.load %arg5[%c0_13, %c0_14] : memref<128x128xf32, #tpu.memory_space<vmem>>, vector<128x128xf32>
    %cst_15 = arith.constant dense<0.000000e+00> : vector<16x128xf32>
    %25 = tpu.matmul %23, %24, %cst_15 {dimension_numbers = #tpu.dot_dimension_numbers<[1], [0], [0], [1], [0, 0, 1, 1], [], []>} : vector<16x128xf32>, vector<128x128xf32>, vector<16x128xf32> -> vector<16x128xf32>
    %26 = vector.shape_cast %25 : vector<16x128xf32> to vector<2x8x128xf32>
    %c0_16 = arith.constant 0 : index
    %c0_17 = arith.constant 0 : index
    %27 = vector.load %arg6[%c0_16, %c0_17] : memref<1x128xf32, #tpu.memory_space<vmem>>, vector<1x128xf32>
    %28 = vector.shape_cast %27 : vector<1x128xf32> to vector<1x1x128xf32>
    %29 = vector.broadcast %28 : vector<1x1x128xf32> to vector<2x8x128xf32>
    %30 = arith.addf %26, %29 : vector<2x8x128xf32>
    %cst_18 = arith.constant dense<0.000000e+00> : vector<2x128xf32>
    %31 = vector.multi_reduction <add>, %22, %cst_18 [1] : vector<2x8x128xf32> to vector<2x128xf32>
    %c0_19 = arith.constant 0 : index
    %c0_20 = arith.constant 0 : index
    %32 = vector.load %arg7[%c0_19, %c0_20] : memref<128x128xf32, #tpu.memory_space<vmem>>, vector<128x128xf32>
    %cst_21 = arith.constant dense<0.000000e+00> : vector<2x128xf32>
    %33 = tpu.matmul %31, %32, %cst_21 {dimension_numbers = #tpu.dot_dimension_numbers<[1], [0], [0], [1], [0, 0, 1, 1], [], []>} : vector<2x128xf32>, vector<128x128xf32>, vector<2x128xf32> -> vector<2x128xf32>
    %34 = vector.shape_cast %33 : vector<2x128xf32> to vector<2x1x128xf32>
    %35 = vector.broadcast %34 : vector<2x1x128xf32> to vector<2x8x128xf32>
    %36 = arith.subf %30, %35 : vector<2x8x128xf32>
    %cst_22 = arith.constant 0.000000e+00 : f32
    %37 = vector.broadcast %cst_22 : f32 to vector<2x8x128xf32>
    %38 = arith.cmpf ogt, %36, %37 : vector<2x8x128xf32>
    %cst_23 = arith.constant 0.000000e+00 : f32
    %39 = vector.broadcast %cst_23 : f32 to vector<2x8x128xf32>
    %40 = arith.minimumf %36, %39 : vector<2x8x128xf32>
    %41 = math.exp %40 : vector<2x8x128xf32>
    %cst_24 = arith.constant 1.000000e+00 : f32
    %42 = vector.broadcast %cst_24 : f32 to vector<2x8x128xf32>
    %43 = arith.subf %41, %42 : vector<2x8x128xf32>
    %44 = arith.select %38, %36, %43 : vector<2x8x128xi1>, vector<2x8x128xf32>
    %45 = vector.shape_cast %44 : vector<2x8x128xf32> to vector<16x128xf32>
    %c0_25 = arith.constant 0 : index
    %c0_26 = arith.constant 0 : index
    %46 = vector.load %arg8[%c0_25, %c0_26] : memref<128x128xf32, #tpu.memory_space<vmem>>, vector<128x128xf32>
    %cst_27 = arith.constant dense<0.000000e+00> : vector<16x128xf32>
    %47 = tpu.matmul %45, %46, %cst_27 {dimension_numbers = #tpu.dot_dimension_numbers<[1], [0], [0], [1], [0, 0, 1, 1], [], []>} : vector<16x128xf32>, vector<128x128xf32>, vector<16x128xf32> -> vector<16x128xf32>
    %48 = vector.shape_cast %47 : vector<16x128xf32> to vector<2x8x128xf32>
    %c0_28 = arith.constant 0 : index
    %c0_29 = arith.constant 0 : index
    %49 = vector.load %arg9[%c0_28, %c0_29] : memref<1x128xf32, #tpu.memory_space<vmem>>, vector<1x128xf32>
    %50 = vector.shape_cast %49 : vector<1x128xf32> to vector<1x1x128xf32>
    %51 = vector.broadcast %50 : vector<1x1x128xf32> to vector<2x8x128xf32>
    %52 = arith.addf %48, %51 : vector<2x8x128xf32>
    %cst_30 = arith.constant dense<0.000000e+00> : vector<2x128xf32>
    %53 = vector.multi_reduction <add>, %44, %cst_30 [1] : vector<2x8x128xf32> to vector<2x128xf32>
    %c0_31 = arith.constant 0 : index
    %c0_32 = arith.constant 0 : index
    %54 = vector.load %arg10[%c0_31, %c0_32] : memref<128x128xf32, #tpu.memory_space<vmem>>, vector<128x128xf32>
    %cst_33 = arith.constant dense<0.000000e+00> : vector<2x128xf32>
    %55 = tpu.matmul %53, %54, %cst_33 {dimension_numbers = #tpu.dot_dimension_numbers<[1], [0], [0], [1], [0, 0, 1, 1], [], []>} : vector<2x128xf32>, vector<128x128xf32>, vector<2x128xf32> -> vector<2x128xf32>
    %56 = vector.shape_cast %55 : vector<2x128xf32> to vector<2x1x128xf32>
    %57 = vector.broadcast %56 : vector<2x1x128xf32> to vector<2x8x128xf32>
    %58 = arith.subf %52, %57 : vector<2x8x128xf32>
    %cst_34 = arith.constant 0.000000e+00 : f32
    %59 = vector.broadcast %cst_34 : f32 to vector<2x8x128xf32>
    %60 = arith.cmpf ogt, %58, %59 : vector<2x8x128xf32>
    %cst_35 = arith.constant 0.000000e+00 : f32
    %61 = vector.broadcast %cst_35 : f32 to vector<2x8x128xf32>
    %62 = arith.minimumf %58, %61 : vector<2x8x128xf32>
    %63 = math.exp %62 : vector<2x8x128xf32>
    %cst_36 = arith.constant 1.000000e+00 : f32
    %64 = vector.broadcast %cst_36 : f32 to vector<2x8x128xf32>
    %65 = arith.subf %63, %64 : vector<2x8x128xf32>
    %66 = arith.select %60, %58, %65 : vector<2x8x128xi1>, vector<2x8x128xf32>
    %cst_37 = arith.constant dense<0.000000e+00> : vector<2x128xf32>
    %67 = vector.multi_reduction <add>, %66, %cst_37 [1] : vector<2x8x128xf32> to vector<2x128xf32>
    %cst_38 = arith.constant 8.000000e+00 : f32
    %68 = vector.broadcast %cst_38 : f32 to vector<2x128xf32>
    %69 = arith.divf %67, %68 : vector<2x128xf32>
    %c0_39 = arith.constant 0 : index
    %c0_40 = arith.constant 0 : index
    %70 = vector.load %arg11[%c0_39, %c0_40] : memref<128x128xf32, #tpu.memory_space<vmem>>, vector<128x128xf32>
    %cst_41 = arith.constant dense<0.000000e+00> : vector<2x128xf32>
    %71 = tpu.matmul %69, %70, %cst_41 {dimension_numbers = #tpu.dot_dimension_numbers<[1], [0], [0], [1], [0, 0, 1, 1], [], []>} : vector<2x128xf32>, vector<128x128xf32>, vector<2x128xf32> -> vector<2x128xf32>
    %c0_42 = arith.constant 0 : index
    %c0_43 = arith.constant 0 : index
    %72 = vector.load %arg12[%c0_42, %c0_43] : memref<1x128xf32, #tpu.memory_space<vmem>>, vector<1x128xf32>
    %73 = vector.broadcast %72 : vector<1x128xf32> to vector<2x128xf32>
    %74 = arith.addf %71, %73 : vector<2x128xf32>
    %cst_44 = arith.constant 0.000000e+00 : f32
    %75 = vector.broadcast %cst_44 : f32 to vector<2x128xf32>
    %76 = arith.cmpf ogt, %74, %75 : vector<2x128xf32>
    %cst_45 = arith.constant 0.000000e+00 : f32
    %77 = vector.broadcast %cst_45 : f32 to vector<2x128xf32>
    %78 = arith.minimumf %74, %77 : vector<2x128xf32>
    %79 = math.exp %78 : vector<2x128xf32>
    %cst_46 = arith.constant 1.000000e+00 : f32
    %80 = vector.broadcast %cst_46 : f32 to vector<2x128xf32>
    %81 = arith.subf %79, %80 : vector<2x128xf32>
    %82 = arith.select %76, %74, %81 : vector<2x128xi1>, vector<2x128xf32>
    %c0_47 = arith.constant 0 : index
    %c0_48 = arith.constant 0 : index
    %83 = vector.load %arg13[%c0_47, %c0_48] : memref<128x128xf32, #tpu.memory_space<vmem>>, vector<128x128xf32>
    %cst_49 = arith.constant dense<0.000000e+00> : vector<2x128xf32>
    %84 = tpu.matmul %82, %83, %cst_49 {dimension_numbers = #tpu.dot_dimension_numbers<[1], [0], [0], [1], [0, 0, 1, 1], [], []>} : vector<2x128xf32>, vector<128x128xf32>, vector<2x128xf32> -> vector<2x128xf32>
    %c0_50 = arith.constant 0 : index
    %c0_51 = arith.constant 0 : index
    %85 = vector.load %arg14[%c0_50, %c0_51] : memref<1x128xf32, #tpu.memory_space<vmem>>, vector<1x128xf32>
    %86 = vector.broadcast %85 : vector<1x128xf32> to vector<2x128xf32>
    %87 = arith.addf %84, %86 : vector<2x128xf32>
    %c0_52 = arith.constant 0 : index
    %c0_53 = arith.constant 0 : index
    %88 = vector.load %arg15[%c0_52, %c0_53] : memref<2x128xf32, #tpu.memory_space<vmem>>, vector<2x128xf32>
    tpu.vector_store %arg15[%c0_52, %c0_53], %87 {strides = array<i32>} : memref<2x128xf32, #tpu.memory_space<vmem>>, vector<2x128xf32>,
    return
  }
  func.func @transform_0(%arg0: i32) -> (i32, i32, i32) {
    %c0_i32 = arith.constant 0 : i32
    %c0_i32_0 = arith.constant 0 : i32
    %c0_i32_1 = arith.constant 0 : i32
    return %arg0, %c0_i32, %c0_i32_0 : i32, i32, i32
  }
  func.func @transform_1(%arg0: i32) -> (i32, i32) {
    %c0_i32 = arith.constant 0 : i32
    %c0_i32_0 = arith.constant 0 : i32
    %c0_i32_1 = arith.constant 0 : i32
    return %c0_i32, %c0_i32_0 : i32, i32
  }
  func.func @transform_2(%arg0: i32) -> (i32, i32) {
    %c0_i32 = arith.constant 0 : i32
    %c0_i32_0 = arith.constant 0 : i32
    %c0_i32_1 = arith.constant 0 : i32
    return %c0_i32, %c0_i32_0 : i32, i32
  }
  func.func @transform_3(%arg0: i32) -> (i32, i32) {
    %c0_i32 = arith.constant 0 : i32
    %c0_i32_0 = arith.constant 0 : i32
    %c0_i32_1 = arith.constant 0 : i32
    return %c0_i32, %c0_i32_0 : i32, i32
  }
  func.func @transform_4(%arg0: i32) -> (i32, i32) {
    %c0_i32 = arith.constant 0 : i32
    %c0_i32_0 = arith.constant 0 : i32
    %c0_i32_1 = arith.constant 0 : i32
    return %c0_i32, %c0_i32_0 : i32, i32
  }
  func.func @transform_5(%arg0: i32) -> (i32, i32) {
    %c0_i32 = arith.constant 0 : i32
    %c0_i32_0 = arith.constant 0 : i32
    %c0_i32_1 = arith.constant 0 : i32
    return %c0_i32, %c0_i32_0 : i32, i32
  }
  func.func @transform_6(%arg0: i32) -> (i32, i32) {
    %c0_i32 = arith.constant 0 : i32
    %c0_i32_0 = arith.constant 0 : i32
    %c0_i32_1 = arith.constant 0 : i32
    return %c0_i32, %c0_i32_0 : i32, i32
  }
  func.func @transform_7(%arg0: i32) -> (i32, i32) {
    %c0_i32 = arith.constant 0 : i32
    %c0_i32_0 = arith.constant 0 : i32
    %c0_i32_1 = arith.constant 0 : i32
    return %c0_i32, %c0_i32_0 : i32, i32
  }
  func.func @transform_8(%arg0: i32) -> (i32, i32) {
    %c0_i32 = arith.constant 0 : i32
    %c0_i32_0 = arith.constant 0 : i32
    %c0_i32_1 = arith.constant 0 : i32
    return %c0_i32, %c0_i32_0 : i32, i32
  }
  func.func @transform_9(%arg0: i32) -> (i32, i32) {
    %c0_i32 = arith.constant 0 : i32
    %c0_i32_0 = arith.constant 0 : i32
    %c0_i32_1 = arith.constant 0 : i32
    return %c0_i32, %c0_i32_0 : i32, i32
  }
  func.func @transform_10(%arg0: i32) -> (i32, i32) {
    %c0_i32 = arith.constant 0 : i32
    %c0_i32_0 = arith.constant 0 : i32
    %c0_i32_1 = arith.constant 0 : i32
    return %c0_i32, %c0_i32_0 : i32, i32
  }
  func.func @transform_11(%arg0: i32) -> (i32, i32) {
    %c0_i32 = arith.constant 0 : i32
    %c0_i32_0 = arith.constant 0 : i32
    %c0_i32_1 = arith.constant 0 : i32
    return %c0_i32, %c0_i32_0 : i32, i32
  }
  func.func @transform_12(%arg0: i32) -> (i32, i32) {
    %c0_i32 = arith.constant 0 : i32
    %c0_i32_0 = arith.constant 0 : i32
    %c0_i32_1 = arith.constant 0 : i32
    return %c0_i32, %c0_i32_0 : i32, i32
  }
  func.func @transform_13(%arg0: i32) -> (i32, i32) {
    %c0_i32 = arith.constant 0 : i32
    %c0_i32_0 = arith.constant 0 : i32
    %c0_i32_1 = arith.constant 0 : i32
    return %c0_i32, %c0_i32_0 : i32, i32
  }
  func.func @transform_14(%arg0: i32) -> (i32, i32) {
    %c0_i32 = arith.constant 0 : i32
    %c0_i32_0 = arith.constant 0 : i32
    return %arg0, %c0_i32 : i32, i32
  }
}

</mosaic_0001>

<llo_original>
// kernel: tpu_custom_call.1
$region0: #{tpu_custom_call.1}
  #allocation0 [shape = 'u32[]', space=smem, size = 0x4, offset = 0x4, fixed_abs, tag = 'smem constant byte address 0x4 - core index']
  #allocation1 [shape = 'u32[144,128]{1,0:T(1,128)}', space=vmem, size = 0x12000, scoped, tag = 'internal scratch']
  %s0 = inlined_call_operand.vmem [shape: f32[2,8,3], index: 0, kind: input, shape index: {}]
  %s1 = inlined_call_operand.vmem [shape: f32[3,128], index: 1, kind: input, shape index: {}]
  %s2 = inlined_call_operand.vmem [shape: f32[1,128], index: 2, kind: input, shape index: {}]
  %s3 = inlined_call_operand.vmem [shape: f32[3,128], index: 3, kind: input, shape index: {}]
  %s4 = inlined_call_operand.hbm [shape: f32[128,128], index: 4, kind: input, shape index: {}]
  %s5 = inlined_call_operand.vmem [shape: f32[1,128], index: 5, kind: input, shape index: {}]
  %s6 = inlined_call_operand.hbm [shape: f32[128,128], index: 6, kind: input, shape index: {}]
  %s7 = inlined_call_operand.hbm [shape: f32[128,128], index: 7, kind: input, shape index: {}]
  %s8 = inlined_call_operand.vmem [shape: f32[1,128], index: 8, kind: input, shape index: {}]
  %s9 = inlined_call_operand.hbm [shape: f32[128,128], index: 9, kind: input, shape index: {}]
  %s10 = inlined_call_operand.hbm [shape: f32[128,128], index: 10, kind: input, shape index: {}]
  %s11 = inlined_call_operand.vmem [shape: f32[1,128], index: 11, kind: input, shape index: {}]
  %s12 = inlined_call_operand.hbm [shape: f32[128,128], index: 12, kind: input, shape index: {}]
  %s13 = inlined_call_operand.vmem [shape: f32[1,128], index: 13, kind: input, shape index: {}]
  %s14 = inlined_call_operand.hbm [shape: f32[2,128], index: 14, kind: output, shape index: {}]
  %s15 = sld [smem:[#allocation0]]
  $region90: #{tpu_custom_call.1} parent=0
    _
  %s17 = ssub.s32 1, %s15
  %s18 = scalar_select 0, %s17, %s15
  $region1: #{tpu_custom_call.1} parent=0
    #allocation2 [shape = 'u8[65536]{0}', space=vmem, size = 0x10000, scoped, tag = 'input window, operand 4, single buffered']
    #allocation3 [shape = 's32[1]{0}', space=sflag, size = 0x4, scoped, tag = 'scoped memory for tpu_custom_call.1']
    #allocation4 [shape = 's32[1]{0}', space=sflag, size = 0x4, scoped, tag = 'scoped memory for tpu_custom_call.1']
    #allocation5 [shape = 'u8[65536]{0}', space=vmem, size = 0x10000, scoped, tag = 'input window, operand 6, single buffered']
    #allocation6 [shape = 's32[1]{0}', space=sflag, size = 0x4, scoped, tag = 'scoped memory for tpu_custom_call.1']
    #allocation7 [shape = 'u8[65536]{0}', space=vmem, size = 0x10000, scoped, tag = 'input window, operand 7, single buffered']
    #allocation8 [shape = 'u8[65536]{0}', space=vmem, size = 0x10000, scoped, tag = 'input window, operand 9, single buffered']
    #allocation9 [shape = 's32[1]{0}', space=sflag, size = 0x4, scoped, tag = 'scoped memory for tpu_custom_call.1']
    #allocation10 [shape = 'u8[65536]{0}', space=vmem, size = 0x10000, scoped, tag = 'input window, operand 10, single buffered']
    #allocation11 [shape = 'u8[65536]{0}', space=vmem, size = 0x10000, scoped, tag = 'input window, operand 12, single buffered']
    #allocation12 [shape = 's32[1]{0}', space=sflag, size = 0x4, scoped, tag = 'scoped memory for tpu_custom_call.1']
    #allocation13 [shape = 'u8[1024]{0}', space=vmem, size = 0x400, scoped, tag = 'output window, operand 0, single buffered']
    %19 = vsyncpa [#allocation3], 0
    %20 = vsyncpa [#allocation6], 0
    %21 = vsyncpa [#allocation9], 0
    %22 = vsyncpa [#allocation12], 0
    %23 = vsyncpa [#allocation4], 0
    // Predicated region
    $region2: #{tpu_custom_call.1} parent=1 // pred_check
      _
    $region3: #{tpu_custom_call.1} parent=1 // pred_check_branch
      %25 = sbr.rel (0) target = $region5
    $region4: #{tpu_custom_call.1} parent=1 // pred_region
      _
    $region5: #{tpu_custom_call.1} parent=1 // pred_fallthru
      _
    // Predicated region
    $region6: #{tpu_custom_call.1} parent=1 // pred_check
      _
    $region7: #{tpu_custom_call.1} parent=1 // pred_check_branch
      %27 = sbr.rel (0) target = $region9
    $region8: #{tpu_custom_call.1} parent=1 // pred_region
      _
    $region9: #{tpu_custom_call.1} parent=1 // pred_fallthru
      _
    // Predicated region
    $region10: #{tpu_custom_call.1} parent=1 // pred_check
      _
    $region11: #{tpu_custom_call.1} parent=1 // pred_check_branch
      %29 = sbr.rel (0) target = $region13
    $region12: #{tpu_custom_call.1} parent=1 // pred_region
      _
    $region13: #{tpu_custom_call.1} parent=1 // pred_fallthru
      _
    // Predicated region
    $region14: #{tpu_custom_call.1} parent=1 // pred_check
      _
    $region15: #{tpu_custom_call.1} parent=1 // pred_check_branch
      %31 = sbr.rel (0) target = $region17
    $region16: #{tpu_custom_call.1} parent=1 // pred_region
      _
    $region17: #{tpu_custom_call.1} parent=1 // pred_fallthru
      _
    // Predicated region
    $region18: #{tpu_custom_call.1} parent=1 // pred_check
      _
    $region19: #{tpu_custom_call.1} parent=1 // pred_check_branch
      %33 = sbr.rel (0) target = $region21
    $region20: #{tpu_custom_call.1} parent=1 // pred_region
      %s35 = ssub.s32 2048, 2048
      %36 = vsyncadd [#allocation3], %s35
      %s37 = sshll.u32 [#allocation2], 4
      %s38 = int_to_ptr.vmem [resolvable:$true] %s37
      %43 = dma.hbm_to_vmem [thread:$0]  %s4, 2048, %s38, [#allocation3], 128, 128, 8
    $region21: #{tpu_custom_call.1} parent=1 // pred_fallthru
      _
    // Predicated region
    $region22: #{tpu_custom_call.1} parent=1 // pred_check
      _
    $region23: #{tpu_custom_call.1} parent=1 // pred_check_branch
      %45 = sbr.rel (0) target = $region25
    $region24: #{tpu_custom_call.1} parent=1 // pred_region
      _
    $region25: #{tpu_custom_call.1} parent=1 // pred_fallthru
      _
    // Predicated region
    $region26: #{tpu_custom_call.1} parent=1 // pred_check
      _
    $region27: #{tpu_custom_call.1} parent=1 // pred_check_branch
      %47 = sbr.rel (0) target = $region29
    $region28: #{tpu_custom_call.1} parent=1 // pred_region
      %s49 = ssub.s32 2048, 2048
      %50 = vsyncadd [#allocation6], %s49
      %s51 = sshll.u32 [#allocation5], 4
      %s52 = int_to_ptr.vmem [resolvable:$true] %s51
      %57 = dma.hbm_to_vmem [thread:$0]  %s6, 2048, %s52, [#allocation6], 128, 128, 8
    $region29: #{tpu_custom_call.1} parent=1 // pred_fallthru
      _
    // Predicated region
    $region30: #{tpu_custom_call.1} parent=1 // pred_check
      _
    $region31: #{tpu_custom_call.1} parent=1 // pred_check_branch
      %59 = sbr.rel (0) target = $region33
    $region32: #{tpu_custom_call.1} parent=1 // pred_region
      %s61 = ssub.s32 2048, 2048
      %62 = vsyncadd [#allocation6], %s61
      %s63 = sshll.u32 [#allocation7], 4
      %s64 = int_to_ptr.vmem [resolvable:$true] %s63
      %69 = dma.hbm_to_vmem [thread:$0]  %s7, 2048, %s64, [#allocation6], 128, 128, 8
    $region33: #{tpu_custom_call.1} parent=1 // pred_fallthru
      _
    // Predicated region
    $region34: #{tpu_custom_call.1} parent=1 // pred_check
      _
    $region35: #{tpu_custom_call.1} parent=1 // pred_check_branch
      %71 = sbr.rel (0) target = $region37
    $region36: #{tpu_custom_call.1} parent=1 // pred_region
      _
    $region37: #{tpu_custom_call.1} parent=1 // pred_fallthru
      _
    // Predicated region
    $region38: #{tpu_custom_call.1} parent=1 // pred_check
      _
    $region39: #{tpu_custom_call.1} parent=1 // pred_check_branch
      %73 = sbr.rel (0) target = $region41
    $region40: #{tpu_custom_call.1} parent=1 // pred_region
      %s75 = ssub.s32 2048, 2048
      %76 = vsyncadd [#allocation9], %s75
      %s77 = sshll.u32 [#allocation8], 4
      %s78 = int_to_ptr.vmem [resolvable:$true] %s77
      %83 = dma.hbm_to_vmem [thread:$0]  %s9, 2048, %s78, [#allocation9], 128, 128, 8
    $region41: #{tpu_custom_call.1} parent=1 // pred_fallthru
      _
    // Predicated region
    $region42: #{tpu_custom_call.1} parent=1 // pred_check
      _
    $region43: #{tpu_custom_call.1} parent=1 // pred_check_branch
      %85 = sbr.rel (0) target = $region45
    $region44: #{tpu_custom_call.1} parent=1 // pred_region
      %s87 = ssub.s32 2048, 2048
      %88 = vsyncadd [#allocation9], %s87
      %s89 = sshll.u32 [#allocation10], 4
      %s90 = int_to_ptr.vmem [resolvable:$true] %s89
      %95 = dma.hbm_to_vmem [thread:$0]  %s10, 2048, %s90, [#allocation9], 128, 128, 8
    $region45: #{tpu_custom_call.1} parent=1 // pred_fallthru
      _
    // Predicated region
    $region46: #{tpu_custom_call.1} parent=1 // pred_check
      _
    $region47: #{tpu_custom_call.1} parent=1 // pred_check_branch
      %97 = sbr.rel (0) target = $region49
    $region48: #{tpu_custom_call.1} parent=1 // pred_region
      _
    $region49: #{tpu_custom_call.1} parent=1 // pred_fallthru
      _
    // Predicated region
    $region50: #{tpu_custom_call.1} parent=1 // pred_check
      _
    $region51: #{tpu_custom_call.1} parent=1 // pred_check_branch
      %99 = sbr.rel (0) target = $region53
    $region52: #{tpu_custom_call.1} parent=1 // pred_region
      %s101 = ssub.s32 2048, 2048
      %102 = vsyncadd [#allocation12], %s101
      %s103 = sshll.u32 [#allocation11], 4
      %s104 = int_to_ptr.vmem [resolvable:$true] %s103
      %109 = dma.hbm_to_vmem [thread:$0]  %s12, 2048, %s104, [#allocation12], 128, 128, 8
    $region53: #{tpu_custom_call.1} parent=1 // pred_fallthru
      _
    // Predicated region
    $region54: #{tpu_custom_call.1} parent=1 // pred_check
      _
    $region55: #{tpu_custom_call.1} parent=1 // pred_check_branch
      %111 = sbr.rel (0) target = $region57
    $region56: #{tpu_custom_call.1} parent=1 // pred_region
      _
    $region57: #{tpu_custom_call.1} parent=1 // pred_fallthru
      _
    // Predicated region
    $region58: #{tpu_custom_call.1} parent=1 // pred_check
      _
    $region59: #{tpu_custom_call.1} parent=1 // pred_check_branch
      %113 = sbr.rel (0) target = $region61
    $region60: #{tpu_custom_call.1} parent=1 // pred_region
      %114 = dma.done [#allocation3], 2048
    $region61: #{tpu_custom_call.1} parent=1 // pred_fallthru
      _
    // Predicated region
    $region62: #{tpu_custom_call.1} parent=1 // pred_check
      _
    $region63: #{tpu_custom_call.1} parent=1 // pred_check_branch
      %116 = sbr.rel (0) target = $region65
    $region64: #{tpu_custom_call.1} parent=1 // pred_region
      %117 = dma.done [#allocation6], 2048
    $region65: #{tpu_custom_call.1} parent=1 // pred_fallthru
      _
    // Predicated region
    $region66: #{tpu_custom_call.1} parent=1 // pred_check
      _
    $region67: #{tpu_custom_call.1} parent=1 // pred_check_branch
      %119 = sbr.rel (0) target = $region69
    $region68: #{tpu_custom_call.1} parent=1 // pred_region
      %120 = dma.done [#allocation6], 2048
    $region69: #{tpu_custom_call.1} parent=1 // pred_fallthru
      _
    // Predicated region
    $region70: #{tpu_custom_call.1} parent=1 // pred_check
      _
    $region71: #{tpu_custom_call.1} parent=1 // pred_check_branch
      %122 = sbr.rel (0) target = $region73
    $region72: #{tpu_custom_call.1} parent=1 // pred_region
      %123 = dma.done [#allocation9], 2048
    $region73: #{tpu_custom_call.1} parent=1 // pred_fallthru
      _
    // Predicated region
    $region74: #{tpu_custom_call.1} parent=1 // pred_check
      _
    $region75: #{tpu_custom_call.1} parent=1 // pred_check_branch
      %125 = sbr.rel (0) target = $region77
    $region76: #{tpu_custom_call.1} parent=1 // pred_region
      %126 = dma.done [#allocation9], 2048
    $region77: #{tpu_custom_call.1} parent=1 // pred_fallthru
      _
    // Predicated region
    $region78: #{tpu_custom_call.1} parent=1 // pred_check
      _
    $region79: #{tpu_custom_call.1} parent=1 // pred_check_branch
      %128 = sbr.rel (0) target = $region81
    $region80: #{tpu_custom_call.1} parent=1 // pred_region
      %129 = dma.done [#allocation12], 2048
    $region81: #{tpu_custom_call.1} parent=1 // pred_fallthru
      _
    %v130 = vld [vmem:[%s0] sm:$0xff]
    %v131 = vld [vmem:[%s0 + $0x8] sm:$0xff]
    %v132 = vld [vmem:[%s1] sm:$0x7]
    %vm133 = vcmask 23552
    %v135 = vsel %vm133, %v130, 0
    %v138 = vsel %vm133, %v131, 0
    %vm140 = vcmask 1042432
    %v142 = vsel %vm140, %v132, 0
    %144 = vmatprep.subr.mxu0 0.0
    %145 = vmatpush1.msra.mxu0 %v142
    %146 = vmatprep.subr.mxu0 0.0
    %147 = vmatpush1.msra.mxu0 0.0
    %148 = vmatprep.subr.mxu0 0.0
    %149 = vmatpush1.msra.mxu0 0.0
    %150 = vmatprep.subr.mxu0 0.0
    %151 = vmatpush1.msra.mxu0 0.0
    %152 = vmatprep.subr.mxu0 0.0
    %153 = vmatpush1.msra.mxu0 0.0
    %154 = vmatprep.subr.mxu0 0.0
    %155 = vmatpush1.msra.mxu0 0.0
    %156 = vmatprep.subr.mxu0 0.0
    %157 = vmatpush1.msra.mxu0 0.0
    %158 = vmatprep.subr.mxu0 0.0
    %159 = vmatpush1.msra.mxu0 0.0
    %160 = vmatprep.subr.mxu0 0.0
    %161 = vmatpush1.msra.mxu0 0.0
    %162 = vmatprep.subr.mxu0 0.0
    %163 = vmatpush1.msra.mxu0 0.0
    %164 = vmatprep.subr.mxu0 0.0
    %165 = vmatpush1.msra.mxu0 0.0
    %166 = vmatprep.subr.mxu0 0.0
    %167 = vmatpush1.msra.mxu0 0.0
    %168 = vmatprep.subr.mxu0 0.0
    %169 = vmatpush1.msra.mxu0 0.0
    %170 = vmatprep.subr.mxu0 0.0
    %171 = vmatpush1.msra.mxu0 0.0
    %172 = vmatprep.subr.mxu0 0.0
    %173 = vmatpush1.msra.mxu0 0.0
    %174 = vmatprep.subr.mxu0 0.0
    %175 = vmatpush1.msra.mxu0 0.0
    %176 = vmatprep.subr.mxu0 0.0
    %177 = vmatpush1.msra.mxu0 0.0
    %178 = vmatprep.subr.mxu0 0.0
    %179 = vmatpush1.msra.mxu0 0.0
    %180 = vmatprep.subr.mxu0 0.0
    %181 = vmatpush1.msra.mxu0 0.0
    %182 = vmatprep.subr.mxu0 0.0
    %183 = vmatpush1.msra.mxu0 0.0
    %184 = vmatprep.subr.mxu0 0.0
    %185 = vmatpush1.msra.mxu0 0.0
    %186 = vmatprep.subr.mxu0 0.0
    %187 = vmatpush1.msra.mxu0 0.0
    %188 = vmatprep.subr.mxu0 0.0
    %189 = vmatpush1.msra.mxu0 0.0
    %190 = vmatprep.subr.mxu0 0.0
    %191 = vmatpush1.msra.mxu0 0.0
    %192 = vmatprep.subr.mxu0 0.0
    %193 = vmatpush1.msra.mxu0 0.0
    %194 = vmatprep.subr.mxu0 0.0
    %195 = vmatpush1.msra.mxu0 0.0
    %196 = vmatprep.subr.mxu0 0.0
    %197 = vmatpush1.msra.mxu0 0.0
    %198 = vmatprep.subr.mxu0 0.0
    %199 = vmatpush1.msra.mxu0 0.0
    %200 = vmatprep.subr.mxu0 0.0
    %201 = vmatpush1.msra.mxu0 0.0
    %202 = vmatprep.subr.mxu0 0.0
    %203 = vmatpush1.msra.mxu0 0.0
    %204 = vmatprep.subr.mxu0 0.0
    %205 = vmatpush1.msra.mxu0 0.0
    %206 = vmatprep.subr.mxu0 0.0
    %207 = vmatpush1.msra.mxu0 0.0
    %208 = vmatprep.mubr.f32.mxu0 0.0
    %209 = vmatmul.mubr.f32.gmra.mrb[0].mxu0 %v135
    %v210 = vpop.f32.mrb[0].mxu0
    %v211 = vadd.f32 0.0, %v210
    %v212 = vpop.f32.mrb[0].mxu0
    %213 = vmatprep.mubr.f32.mxu0 0.0
    %214 = vmatmul.mubr.f32.gmra.mrb[0].mxu0 %v138
    %v215 = vpop.f32.mrb[0].mxu0
    %v216 = vadd.f32 0.0, %v215
    %v217 = vpop.f32.mrb[0].mxu0
    %218 = vdwg.mxu0
    %v219 = vld [vmem:[%s2] sm:$0x1]
    %v221 = vlaneseq
    %v222 = vshrl.u32 %v221, 7
    %v223 = vsub.s32 0, %v222
    %v224 = vrot.slane %v219, %v223
    %v226 = vadd.f32 %v211, %v224
    %v227 = vadd.f32 %v216, %v224
    %v228 = vsel %vm133, %v130, 0.0
    %v229 = vrot.slane %v228, 4
    %v230 = vadd.f32 %v228, %v229
    %v231 = vrot.slane %v230, 2
    %v232 = vadd.f32 %v230, %v231
    %v233 = vrot.slane %v232, 1
    %v234 = vadd.f32 %v232, %v233
    %v235 = vsel %vm133, %v131, 0.0
    %v236 = vrot.slane %v235, 4
    %v237 = vadd.f32 %v235, %v236
    %v238 = vrot.slane %v237, 2
    %v239 = vadd.f32 %v237, %v238
    %v240 = vrot.slane %v239, 1
    %v241 = vadd.f32 %v239, %v240
    %v242 = vld [vmem:[%s3] sm:$0x7]
    %vm245 = vcmask 1041409
    %v246 = vsel %vm245, %v241, %v234
    %v247 = vsel %vm133, %v246, 0
    %v250 = vsel %vm140, %v242, 0
    %252 = vmatprep.subr.mxu0 0.0
    %253 = vmatpush1.msra.mxu0 %v250
    %254 = vmatprep.subr.mxu0 0.0
    %255 = vmatpush1.msra.mxu0 0.0
    %256 = vmatprep.subr.mxu0 0.0
    %257 = vmatpush1.msra.mxu0 0.0
    %258 = vmatprep.subr.mxu0 0.0
    %259 = vmatpush1.msra.mxu0 0.0
    %260 = vmatprep.subr.mxu0 0.0
    %261 = vmatpush1.msra.mxu0 0.0
    %262 = vmatprep.subr.mxu0 0.0
    %263 = vmatpush1.msra.mxu0 0.0
    %264 = vmatprep.subr.mxu0 0.0
    %265 = vmatpush1.msra.mxu0 0.0
    %266 = vmatprep.subr.mxu0 0.0
    %267 = vmatpush1.msra.mxu0 0.0
    %268 = vmatprep.subr.mxu0 0.0
    %269 = vmatpush1.msra.mxu0 0.0
    %270 = vmatprep.subr.mxu0 0.0
    %271 = vmatpush1.msra.mxu0 0.0
    %272 = vmatprep.subr.mxu0 0.0
    %273 = vmatpush1.msra.mxu0 0.0
    %274 = vmatprep.subr.mxu0 0.0
    %275 = vmatpush1.msra.mxu0 0.0
    %276 = vmatprep.subr.mxu0 0.0
    %277 = vmatpush1.msra.mxu0 0.0
    %278 = vmatprep.subr.mxu0 0.0
    %279 = vmatpush1.msra.mxu0 0.0
    %280 = vmatprep.subr.mxu0 0.0
    %281 = vmatpush1.msra.mxu0 0.0
    %282 = vmatprep.subr.mxu0 0.0
    %283 = vmatpush1.msra.mxu0 0.0
    %284 = vmatprep.subr.mxu0 0.0
    %285 = vmatpush1.msra.mxu0 0.0
    %286 = vmatprep.subr.mxu0 0.0
    %287 = vmatpush1.msra.mxu0 0.0
    %288 = vmatprep.subr.mxu0 0.0
    %289 = vmatpush1.msra.mxu0 0.0
    %290 = vmatprep.subr.mxu0 0.0
    %291 = vmatpush1.msra.mxu0 0.0
    %292 = vmatprep.subr.mxu0 0.0
    %293 = vmatpush1.msra.mxu0 0.0
    %294 = vmatprep.subr.mxu0 0.0
    %295 = vmatpush1.msra.mxu0 0.0
    %296 = vmatprep.subr.mxu0 0.0
    %297 = vmatpush1.msra.mxu0 0.0
    %298 = vmatprep.subr.mxu0 0.0
    %299 = vmatpush1.msra.mxu0 0.0
    %300 = vmatprep.subr.mxu0 0.0
    %301 = vmatpush1.msra.mxu0 0.0
    %302 = vmatprep.subr.mxu0 0.0
    %303 = vmatpush1.msra.mxu0 0.0
    %304 = vmatprep.subr.mxu0 0.0
    %305 = vmatpush1.msra.mxu0 0.0
    %306 = vmatprep.subr.mxu0 0.0
    %307 = vmatpush1.msra.mxu0 0.0
    %308 = vmatprep.subr.mxu0 0.0
    %309 = vmatpush1.msra.mxu0 0.0
    %310 = vmatprep.subr.mxu0 0.0
    %311 = vmatpush1.msra.mxu0 0.0
    %312 = vmatprep.subr.mxu0 0.0
    %313 = vmatpush1.msra.mxu0 0.0
    %314 = vmatprep.subr.mxu0 0.0
    %315 = vmatpush1.msra.mxu0 0.0
    %316 = vmatprep.mubr.f32.mxu0 0.0
    %317 = vmatmul.mubr.f32.gmra.mrb[0].mxu0 %v247
    %v318 = vpop.f32.mrb[0].mxu0
    %v319 = vadd.f32 0.0, %v318
    %v320 = vpop.f32.mrb[0].mxu0
    %321 = vdwg.mxu0
    %v324 = vunpack.c.l.s4 1966171168
    %v325 = vunpack.c.0.s8 %v324
    %v326 = vlaneseq
    %v327 = vshrl.u32 %v326, 7
    %v328 = vsub.s32 %v325, %v327
    %v329 = vrot.slane %v319, %v328
    %v330 = vcombine.high %v329, %v329
    %v332 = vunpack.c.l.s4 1966171168
    %v333 = vunpack.c.0.s8 %v332
    %v334 = vlaneseq
    %v335 = vshrl.u32 %v334, 7
    %v336 = vsub.s32 %v333, %v335
    %v337 = vrot.slane %v329, %v336
    %v339 = vunpack.c.l.s4 1966171168
    %v340 = vunpack.c.0.s8 %v339
    %v341 = vlaneseq
    %v342 = vshrl.u32 %v341, 7
    %v343 = vsub.s32 %v340, %v342
    %v344 = vrot.slane %v330, %v343
    %v345 = vlaneseq
    %v346 = vshrl.u32 %v345, 7
    %v347 = vsub.s32 0, %v346
    %v348 = vrot.slane %v337, %v347
    %v349 = vlaneseq
    %v350 = vshrl.u32 %v349, 7
    %v351 = vsub.s32 0, %v350
    %v352 = vrot.slane %v344, %v351
    %v355 = vsub.f32 %v226, %v348
    %v356 = vsub.f32 %v227, %v352
    %vm357 = vcmp.gt.f32.partialorder %v355, 0.0
    %vm358 = vcmp.gt.f32.partialorder %v356, 0.0
    %v359 = vmin.f32 %v355, 0.0
    %v360 = vmin.f32 %v356, 0.0
    %v361 = vmul.f32 %v359, 1.442695
    %v362 = vpow.pop %v361
    %v363 = vmul.f32 %v360, 1.442695
    %v364 = vpow.pop %v363
    %v365 = vsub.f32 %v362, 1.0
    %v366 = vsub.f32 %v364, 1.0
    %v367 = vsel %vm357, %v355, %v365
    %v368 = vsel %vm358, %v356, %v366
    %v369 = vld [vmem:[#allocation2] sm:$0xff]
    %v370 = vld [vmem:[#allocation2 + $0x8] sm:$0xff]
    %v371 = vld [vmem:[#allocation2 + $0x10] sm:$0xff]
    %v372 = vld [vmem:[#allocation2 + $0x18] sm:$0xff]
    %v373 = vld [vmem:[#allocation2 + $0x20] sm:$0xff]
    %v374 = vld [vmem:[#allocation2 + $0x28] sm:$0xff]
    %v375 = vld [vmem:[#allocation2 + $0x30] sm:$0xff]
    %v376 = vld [vmem:[#allocation2 + $0x38] sm:$0xff]
    %v377 = vld [vmem:[#allocation2 + $0x40] sm:$0xff]
    %v378 = vld [vmem:[#allocation2 + $0x48] sm:$0xff]
    %v379 = vld [vmem:[#allocation2 + $0x50] sm:$0xff]
    %v380 = vld [vmem:[#allocation2 + $0x58] sm:$0xff]
    %v381 = vld [vmem:[#allocation2 + $0x60] sm:$0xff]
    %v382 = vld [vmem:[#allocation2 + $0x68] sm:$0xff]
    %v383 = vld [vmem:[#allocation2 + $0x70] sm:$0xff]
    %v384 = vld [vmem:[#allocation2 + $0x78] sm:$0xff]
    %385 = vmatprep.subr.mxu0 0.0
    %386 = vmatpush1.msra.mxu0 %v369
    %387 = vmatprep.subr.mxu0 0.0
    %388 = vmatpush1.msra.mxu0 %v370
    %389 = vmatprep.subr.mxu0 0.0
    %390 = vmatpush1.msra.mxu0 %v371
    %391 = vmatprep.subr.mxu0 0.0
    %392 = vmatpush1.msra.mxu0 %v372
    %393 = vmatprep.subr.mxu0 0.0
    %394 = vmatpush1.msra.mxu0 %v373
    %395 = vmatprep.subr.mxu0 0.0
    %396 = vmatpush1.msra.mxu0 %v374
    %397 = vmatprep.subr.mxu0 0.0
    %398 = vmatpush1.msra.mxu0 %v375
    %399 = vmatprep.subr.mxu0 0.0
    %400 = vmatpush1.msra.mxu0 %v376
    %401 = vmatprep.subr.mxu0 0.0
    %402 = vmatpush1.msra.mxu0 %v377
    %403 = vmatprep.subr.mxu0 0.0
    %404 = vmatpush1.msra.mxu0 %v378
    %405 = vmatprep.subr.mxu0 0.0
    %406 = vmatpush1.msra.mxu0 %v379
    %407 = vmatprep.subr.mxu0 0.0
    %408 = vmatpush1.msra.mxu0 %v380
    %409 = vmatprep.subr.mxu0 0.0
    %410 = vmatpush1.msra.mxu0 %v381
    %411 = vmatprep.subr.mxu0 0.0
    %412 = vmatpush1.msra.mxu0 %v382
    %413 = vmatprep.subr.mxu0 0.0
    %414 = vmatpush1.msra.mxu0 %v383
    %415 = vmatprep.subr.mxu0 0.0
    %416 = vmatpush1.msra.mxu0 %v384
    %417 = vmatprep.subr.mxu0 0.0
    %418 = vmatpush1.msra.mxu0 0.0
    %419 = vmatprep.subr.mxu0 0.0
    %420 = vmatpush1.msra.mxu0 0.0
    %421 = vmatprep.subr.mxu0 0.0
    %422 = vmatpush1.msra.mxu0 0.0
    %423 = vmatprep.subr.mxu0 0.0
    %424 = vmatpush1.msra.mxu0 0.0
    %425 = vmatprep.subr.mxu0 0.0
    %426 = vmatpush1.msra.mxu0 0.0
    %427 = vmatprep.subr.mxu0 0.0
    %428 = vmatpush1.msra.mxu0 0.0
    %429 = vmatprep.subr.mxu0 0.0
    %430 = vmatpush1.msra.mxu0 0.0
    %431 = vmatprep.subr.mxu0 0.0
    %432 = vmatpush1.msra.mxu0 0.0
    %433 = vmatprep.subr.mxu0 0.0
    %434 = vmatpush1.msra.mxu0 0.0
    %435 = vmatprep.subr.mxu0 0.0
    %436 = vmatpush1.msra.mxu0 0.0
    %437 = vmatprep.subr.mxu0 0.0
    %438 = vmatpush1.msra.mxu0 0.0
    %439 = vmatprep.subr.mxu0 0.0
    %440 = vmatpush1.msra.mxu0 0.0
    %441 = vmatprep.subr.mxu0 0.0
    %442 = vmatpush1.msra.mxu0 0.0
    %443 = vmatprep.subr.mxu0 0.0
    %444 = vmatpush1.msra.mxu0 0.0
    %445 = vmatprep.subr.mxu0 0.0
    %446 = vmatpush1.msra.mxu0 0.0
    %447 = vmatprep.subr.mxu0 0.0
    %448 = vmatpush1.msra.mxu0 0.0
    %449 = vmatprep.mubr.f32.mxu0 0.0
    %450 = vmatmul.mubr.f32.gmra.mrb[0].mxu0 %v367
    %v451 = vpop.f32.mrb[0].mxu0
    %v452 = vadd.f32 0.0, %v451
    %v453 = vpop.f32.mrb[0].mxu0
    %454 = vmatprep.mubr.f32.mxu0 0.0
    %455 = vmatmul.mubr.f32.gmra.mrb[0].mxu0 %v368
    %v456 = vpop.f32.mrb[0].mxu0
    %v457 = vadd.f32 0.0, %v456
    %v458 = vpop.f32.mrb[0].mxu0
    %459 = vdwg.mxu0
    %v460 = vld [vmem:[%s5] sm:$0x1]
    %v462 = vlaneseq
    %v463 = vshrl.u32 %v462, 7
    %v464 = vsub.s32 0, %v463
    %v465 = vrot.slane %v460, %v464
    %v467 = vadd.f32 %v452, %v465
    %v468 = vadd.f32 %v457, %v465
    %v469 = vrot.slane %v367, 4
    %v470 = vadd.f32 %v367, %v469
    %v471 = vrot.slane %v470, 2
    %v472 = vadd.f32 %v470, %v471
    %v473 = vrot.slane %v472, 1
    %v474 = vadd.f32 %v472, %v473
    %v475 = vrot.slane %v368, 4
    %v476 = vadd.f32 %v368, %v475
    %v477 = vrot.slane %v476, 2
    %v478 = vadd.f32 %v476, %v477
    %v479 = vrot.slane %v478, 1
    %v480 = vadd.f32 %v478, %v479
    %v481 = vld [vmem:[#allocation5] sm:$0xff]
    %v482 = vld [vmem:[#allocation5 + $0x8] sm:$0xff]
    %v483 = vld [vmem:[#allocation5 + $0x10] sm:$0xff]
    %v484 = vld [vmem:[#allocation5 + $0x18] sm:$0xff]
    %v485 = vld [vmem:[#allocation5 + $0x20] sm:$0xff]
    %v486 = vld [vmem:[#allocation5 + $0x28] sm:$0xff]
    %v487 = vld [vmem:[#allocation5 + $0x30] sm:$0xff]
    %v488 = vld [vmem:[#allocation5 + $0x38] sm:$0xff]
    %v489 = vld [vmem:[#allocation5 + $0x40] sm:$0xff]
    %v490 = vld [vmem:[#allocation5 + $0x48] sm:$0xff]
    %v491 = vld [vmem:[#allocation5 + $0x50] sm:$0xff]
    %v492 = vld [vmem:[#allocation5 + $0x58] sm:$0xff]
    %v493 = vld [vmem:[#allocation5 + $0x60] sm:$0xff]
    %v494 = vld [vmem:[#allocation5 + $0x68] sm:$0xff]
    %v495 = vld [vmem:[#allocation5 + $0x70] sm:$0xff]
    %v496 = vld [vmem:[#allocation5 + $0x78] sm:$0xff]
    %v499 = vsel %vm245, %v480, %v474
    %501 = vmatprep.subr.mxu0 0.0
    %502 = vmatpush1.msra.mxu0 %v481
    %503 = vmatprep.subr.mxu0 0.0
    %504 = vmatpush1.msra.mxu0 %v482
    %505 = vmatprep.subr.mxu0 0.0
    %506 = vmatpush1.msra.mxu0 %v483
    %507 = vmatprep.subr.mxu0 0.0
    %508 = vmatpush1.msra.mxu0 %v484
    %509 = vmatprep.subr.mxu0 0.0
    %510 = vmatpush1.msra.mxu0 %v485
    %511 = vmatprep.subr.mxu0 0.0
    %512 = vmatpush1.msra.mxu0 %v486
    %513 = vmatprep.subr.mxu0 0.0
    %514 = vmatpush1.msra.mxu0 %v487
    %515 = vmatprep.subr.mxu0 0.0
    %516 = vmatpush1.msra.mxu0 %v488
    %517 = vmatprep.subr.mxu0 0.0
    %518 = vmatpush1.msra.mxu0 %v489
    %519 = vmatprep.subr.mxu0 0.0
    %520 = vmatpush1.msra.mxu0 %v490
    %521 = vmatprep.subr.mxu0 0.0
    %522 = vmatpush1.msra.mxu0 %v491
    %523 = vmatprep.subr.mxu0 0.0
    %524 = vmatpush1.msra.mxu0 %v492
    %525 = vmatprep.subr.mxu0 0.0
    %526 = vmatpush1.msra.mxu0 %v493
    %527 = vmatprep.subr.mxu0 0.0
    %528 = vmatpush1.msra.mxu0 %v494
    %529 = vmatprep.subr.mxu0 0.0
    %530 = vmatpush1.msra.mxu0 %v495
    %531 = vmatprep.subr.mxu0 0.0
    %532 = vmatpush1.msra.mxu0 %v496
    %533 = vmatprep.subr.mxu0 0.0
    %534 = vmatpush1.msra.mxu0 0.0
    %535 = vmatprep.subr.mxu0 0.0
    %536 = vmatpush1.msra.mxu0 0.0
    %537 = vmatprep.subr.mxu0 0.0
    %538 = vmatpush1.msra.mxu0 0.0
    %539 = vmatprep.subr.mxu0 0.0
    %540 = vmatpush1.msra.mxu0 0.0
    %541 = vmatprep.subr.mxu0 0.0
    %542 = vmatpush1.msra.mxu0 0.0
    %543 = vmatprep.subr.mxu0 0.0
    %544 = vmatpush1.msra.mxu0 0.0
    %545 = vmatprep.subr.mxu0 0.0
    %546 = vmatpush1.msra.mxu0 0.0
    %547 = vmatprep.subr.mxu0 0.0
    %548 = vmatpush1.msra.mxu0 0.0
    %549 = vmatprep.subr.mxu0 0.0
    %550 = vmatpush1.msra.mxu0 0.0
    %551 = vmatprep.subr.mxu0 0.0
    %552 = vmatpush1.msra.mxu0 0.0
    %553 = vmatprep.subr.mxu0 0.0
    %554 = vmatpush1.msra.mxu0 0.0
    %555 = vmatprep.subr.mxu0 0.0
    %556 = vmatpush1.msra.mxu0 0.0
    %557 = vmatprep.subr.mxu0 0.0
    %558 = vmatpush1.msra.mxu0 0.0
    %559 = vmatprep.subr.mxu0 0.0
    %560 = vmatpush1.msra.mxu0 0.0
    %561 = vmatprep.subr.mxu0 0.0
    %562 = vmatpush1.msra.mxu0 0.0
    %563 = vmatprep.subr.mxu0 0.0
    %564 = vmatpush1.msra.mxu0 0.0
    %565 = vmatprep.mubr.f32.mxu0 0.0
    %566 = vmatmul.mubr.f32.gmra.mrb[0].mxu0 %v499
    %v567 = vpop.f32.mrb[0].mxu0
    %v568 = vadd.f32 0.0, %v567
    %v569 = vpop.f32.mrb[0].mxu0
    %570 = vdwg.mxu0
    %v573 = vunpack.c.l.s4 1966171168
    %v574 = vunpack.c.0.s8 %v573
    %v575 = vlaneseq
    %v576 = vshrl.u32 %v575, 7
    %v577 = vsub.s32 %v574, %v576
    %v578 = vrot.slane %v568, %v577
    %v579 = vcombine.high %v578, %v578
    %v581 = vunpack.c.l.s4 1966171168
    %v582 = vunpack.c.0.s8 %v581
    %v583 = vlaneseq
    %v584 = vshrl.u32 %v583, 7
    %v585 = vsub.s32 %v582, %v584
    %v586 = vrot.slane %v578, %v585
    %v588 = vunpack.c.l.s4 1966171168
    %v589 = vunpack.c.0.s8 %v588
    %v590 = vlaneseq
    %v591 = vshrl.u32 %v590, 7
    %v592 = vsub.s32 %v589, %v591
    %v593 = vrot.slane %v579, %v592
    %v594 = vlaneseq
    %v595 = vshrl.u32 %v594, 7
    %v596 = vsub.s32 0, %v595
    %v597 = vrot.slane %v586, %v596
    %v598 = vlaneseq
    %v599 = vshrl.u32 %v598, 7
    %v600 = vsub.s32 0, %v599
    %v601 = vrot.slane %v593, %v600
    %v604 = vsub.f32 %v467, %v597
    %v605 = vsub.f32 %v468, %v601
    %vm606 = vcmp.gt.f32.partialorder %v604, 0.0
    %vm607 = vcmp.gt.f32.partialorder %v605, 0.0
    %v608 = vmin.f32 %v604, 0.0
    %v609 = vmin.f32 %v605, 0.0
    %v610 = vmul.f32 %v608, 1.442695
    %v611 = vpow.pop %v610
    %v612 = vmul.f32 %v609, 1.442695
    %v613 = vpow.pop %v612
    %v614 = vsub.f32 %v611, 1.0
    %v615 = vsub.f32 %v613, 1.0
    %v616 = vsel %vm606, %v604, %v614
    %v617 = vsel %vm607, %v605, %v615
    %v618 = vld [vmem:[#allocation7] sm:$0xff]
    %v619 = vld [vmem:[#allocation7 + $0x8] sm:$0xff]
    %v620 = vld [vmem:[#allocation7 + $0x10] sm:$0xff]
    %v621 = vld [vmem:[#allocation7 + $0x18] sm:$0xff]
    %v622 = vld [vmem:[#allocation7 + $0x20] sm:$0xff]
    %v623 = vld [vmem:[#allocation7 + $0x28] sm:$0xff]
    %v624 = vld [vmem:[#allocation7 + $0x30] sm:$0xff]
    %v625 = vld [vmem:[#allocation7 + $0x38] sm:$0xff]
    %v626 = vld [vmem:[#allocation7 + $0x40] sm:$0xff]
    %v627 = vld [vmem:[#allocation7 + $0x48] sm:$0xff]
    %v628 = vld [vmem:[#allocation7 + $0x50] sm:$0xff]
    %v629 = vld [vmem:[#allocation7 + $0x58] sm:$0xff]
    %v630 = vld [vmem:[#allocation7 + $0x60] sm:$0xff]
    %v631 = vld [vmem:[#allocation7 + $0x68] sm:$0xff]
    %v632 = vld [vmem:[#allocation7 + $0x70] sm:$0xff]
    %v633 = vld [vmem:[#allocation7 + $0x78] sm:$0xff]
    %634 = vmatprep.subr.mxu0 0.0
    %635 = vmatpush1.msra.mxu0 %v618
    %636 = vmatprep.subr.mxu0 0.0
    %637 = vmatpush1.msra.mxu0 %v619
    %638 = vmatprep.subr.mxu0 0.0
    %639 = vmatpush1.msra.mxu0 %v620
    %640 = vmatprep.subr.mxu0 0.0
    %641 = vmatpush1.msra.mxu0 %v621
    %642 = vmatprep.subr.mxu0 0.0
    %643 = vmatpush1.msra.mxu0 %v622
    %644 = vmatprep.subr.mxu0 0.0
    %645 = vmatpush1.msra.mxu0 %v623
    %646 = vmatprep.subr.mxu0 0.0
    %647 = vmatpush1.msra.mxu0 %v624
    %648 = vmatprep.subr.mxu0 0.0
    %649 = vmatpush1.msra.mxu0 %v625
    %650 = vmatprep.subr.mxu0 0.0
    %651 = vmatpush1.msra.mxu0 %v626
    %652 = vmatprep.subr.mxu0 0.0
    %653 = vmatpush1.msra.mxu0 %v627
    %654 = vmatprep.subr.mxu0 0.0
    %655 = vmatpush1.msra.mxu0 %v628
    %656 = vmatprep.subr.mxu0 0.0
    %657 = vmatpush1.msra.mxu0 %v629
    %658 = vmatprep.subr.mxu0 0.0
    %659 = vmatpush1.msra.mxu0 %v630
    %660 = vmatprep.subr.mxu0 0.0
    %661 = vmatpush1.msra.mxu0 %v631
    %662 = vmatprep.subr.mxu0 0.0
    %663 = vmatpush1.msra.mxu0 %v632
    %664 = vmatprep.subr.mxu0 0.0
    %665 = vmatpush1.msra.mxu0 %v633
    %666 = vmatprep.subr.mxu0 0.0
    %667 = vmatpush1.msra.mxu0 0.0
    %668 = vmatprep.subr.mxu0 0.0
    %669 = vmatpush1.msra.mxu0 0.0
    %670 = vmatprep.subr.mxu0 0.0
    %671 = vmatpush1.msra.mxu0 0.0
    %672 = vmatprep.subr.mxu0 0.0
    %673 = vmatpush1.msra.mxu0 0.0
    %674 = vmatprep.subr.mxu0 0.0
    %675 = vmatpush1.msra.mxu0 0.0
    %676 = vmatprep.subr.mxu0 0.0
    %677 = vmatpush1.msra.mxu0 0.0
    %678 = vmatprep.subr.mxu0 0.0
    %679 = vmatpush1.msra.mxu0 0.0
    %680 = vmatprep.subr.mxu0 0.0
    %681 = vmatpush1.msra.mxu0 0.0
    %682 = vmatprep.subr.mxu0 0.0
    %683 = vmatpush1.msra.mxu0 0.0
    %684 = vmatprep.subr.mxu0 0.0
    %685 = vmatpush1.msra.mxu0 0.0
    %686 = vmatprep.subr.mxu0 0.0
    %687 = vmatpush1.msra.mxu0 0.0
    %688 = vmatprep.subr.mxu0 0.0
    %689 = vmatpush1.msra.mxu0 0.0
    %690 = vmatprep.subr.mxu0 0.0
    %691 = vmatpush1.msra.mxu0 0.0
    %692 = vmatprep.subr.mxu0 0.0
    %693 = vmatpush1.msra.mxu0 0.0
    %694 = vmatprep.subr.mxu0 0.0
    %695 = vmatpush1.msra.mxu0 0.0
    %696 = vmatprep.subr.mxu0 0.0
    %697 = vmatpush1.msra.mxu0 0.0
    %698 = vmatprep.mubr.f32.mxu0 0.0
    %699 = vmatmul.mubr.f32.gmra.mrb[0].mxu0 %v616
    %v700 = vpop.f32.mrb[0].mxu0
    %v701 = vadd.f32 0.0, %v700
    %v702 = vpop.f32.mrb[0].mxu0
    %703 = vmatprep.mubr.f32.mxu0 0.0
    %704 = vmatmul.mubr.f32.gmra.mrb[0].mxu0 %v617
    %v705 = vpop.f32.mrb[0].mxu0
    %v706 = vadd.f32 0.0, %v705
    %v707 = vpop.f32.mrb[0].mxu0
    %708 = vdwg.mxu0
    %v709 = vld [vmem:[%s8] sm:$0x1]
    %v711 = vlaneseq
    %v712 = vshrl.u32 %v711, 7
    %v713 = vsub.s32 0, %v712
    %v714 = vrot.slane %v709, %v713
    %v716 = vadd.f32 %v701, %v714
    %v717 = vadd.f32 %v706, %v714
    %v718 = vrot.slane %v616, 4
    %v719 = vadd.f32 %v616, %v718
    %v720 = vrot.slane %v719, 2
    %v721 = vadd.f32 %v719, %v720
    %v722 = vrot.slane %v721, 1
    %v723 = vadd.f32 %v721, %v722
    %v724 = vrot.slane %v617, 4
    %v725 = vadd.f32 %v617, %v724
    %v726 = vrot.slane %v725, 2
    %v727 = vadd.f32 %v725, %v726
    %v728 = vrot.slane %v727, 1
    %v729 = vadd.f32 %v727, %v728
    %v730 = vld [vmem:[#allocation8] sm:$0xff]
    %v731 = vld [vmem:[#allocation8 + $0x8] sm:$0xff]
    %v732 = vld [vmem:[#allocation8 + $0x10] sm:$0xff]
    %v733 = vld [vmem:[#allocation8 + $0x18] sm:$0xff]
    %v734 = vld [vmem:[#allocation8 + $0x20] sm:$0xff]
    %v735 = vld [vmem:[#allocation8 + $0x28] sm:$0xff]
    %v736 = vld [vmem:[#allocation8 + $0x30] sm:$0xff]
    %v737 = vld [vmem:[#allocation8 + $0x38] sm:$0xff]
    %v738 = vld [vmem:[#allocation8 + $0x40] sm:$0xff]
    %v739 = vld [vmem:[#allocation8 + $0x48] sm:$0xff]
    %v740 = vld [vmem:[#allocation8 + $0x50] sm:$0xff]
    %v741 = vld [vmem:[#allocation8 + $0x58] sm:$0xff]
    %v742 = vld [vmem:[#allocation8 + $0x60] sm:$0xff]
    %v743 = vld [vmem:[#allocation8 + $0x68] sm:$0xff]
    %v744 = vld [vmem:[#allocation8 + $0x70] sm:$0xff]
    %v745 = vld [vmem:[#allocation8 + $0x78] sm:$0xff]
    %v748 = vsel %vm245, %v729, %v723
    %750 = vmatprep.subr.mxu0 0.0
    %751 = vmatpush1.msra.mxu0 %v730
    %752 = vmatprep.subr.mxu0 0.0
    %753 = vmatpush1.msra.mxu0 %v731
    %754 = vmatprep.subr.mxu0 0.0
    %755 = vmatpush1.msra.mxu0 %v732
    %756 = vmatprep.subr.mxu0 0.0
    %757 = vmatpush1.msra.mxu0 %v733
    %758 = vmatprep.subr.mxu0 0.0
    %759 = vmatpush1.msra.mxu0 %v734
    %760 = vmatprep.subr.mxu0 0.0
    %761 = vmatpush1.msra.mxu0 %v735
    %762 = vmatprep.subr.mxu0 0.0
    %763 = vmatpush1.msra.mxu0 %v736
    %764 = vmatprep.subr.mxu0 0.0
    %765 = vmatpush1.msra.mxu0 %v737
    %766 = vmatprep.subr.mxu0 0.0
    %767 = vmatpush1.msra.mxu0 %v738
    %768 = vmatprep.subr.mxu0 0.0
    %769 = vmatpush1.msra.mxu0 %v739
    %770 = vmatprep.subr.mxu0 0.0
    %771 = vmatpush1.msra.mxu0 %v740
    %772 = vmatprep.subr.mxu0 0.0
    %773 = vmatpush1.msra.mxu0 %v741
    %774 = vmatprep.subr.mxu0 0.0
    %775 = vmatpush1.msra.mxu0 %v742
    %776 = vmatprep.subr.mxu0 0.0
    %777 = vmatpush1.msra.mxu0 %v743
    %778 = vmatprep.subr.mxu0 0.0
    %779 = vmatpush1.msra.mxu0 %v744
    %780 = vmatprep.subr.mxu0 0.0
    %781 = vmatpush1.msra.mxu0 %v745
    %782 = vmatprep.subr.mxu0 0.0
    %783 = vmatpush1.msra.mxu0 0.0
    %784 = vmatprep.subr.mxu0 0.0
    %785 = vmatpush1.msra.mxu0 0.0
    %786 = vmatprep.subr.mxu0 0.0
    %787 = vmatpush1.msra.mxu0 0.0
    %788 = vmatprep.subr.mxu0 0.0
    %789 = vmatpush1.msra.mxu0 0.0
    %790 = vmatprep.subr.mxu0 0.0
    %791 = vmatpush1.msra.mxu0 0.0
    %792 = vmatprep.subr.mxu0 0.0
    %793 = vmatpush1.msra.mxu0 0.0
    %794 = vmatprep.subr.mxu0 0.0
    %795 = vmatpush1.msra.mxu0 0.0
    %796 = vmatprep.subr.mxu0 0.0
    %797 = vmatpush1.msra.mxu0 0.0
    %798 = vmatprep.subr.mxu0 0.0
    %799 = vmatpush1.msra.mxu0 0.0
    %800 = vmatprep.subr.mxu0 0.0
    %801 = vmatpush1.msra.mxu0 0.0
    %802 = vmatprep.subr.mxu0 0.0
    %803 = vmatpush1.msra.mxu0 0.0
    %804 = vmatprep.subr.mxu0 0.0
    %805 = vmatpush1.msra.mxu0 0.0
    %806 = vmatprep.subr.mxu0 0.0
    %807 = vmatpush1.msra.mxu0 0.0
    %808 = vmatprep.subr.mxu0 0.0
    %809 = vmatpush1.msra.mxu0 0.0
    %810 = vmatprep.subr.mxu0 0.0
    %811 = vmatpush1.msra.mxu0 0.0
    %812 = vmatprep.subr.mxu0 0.0
    %813 = vmatpush1.msra.mxu0 0.0
    %814 = vmatprep.mubr.f32.mxu0 0.0
    %815 = vmatmul.mubr.f32.gmra.mrb[0].mxu0 %v748
    %v816 = vpop.f32.mrb[0].mxu0
    %v817 = vadd.f32 0.0, %v816
    %v818 = vpop.f32.mrb[0].mxu0
    %819 = vdwg.mxu0
    %v822 = vunpack.c.l.s4 1966171168
    %v823 = vunpack.c.0.s8 %v822
    %v824 = vlaneseq
    %v825 = vshrl.u32 %v824, 7
    %v826 = vsub.s32 %v823, %v825
    %v827 = vrot.slane %v817, %v826
    %v828 = vcombine.high %v827, %v827
    %v830 = vunpack.c.l.s4 1966171168
    %v831 = vunpack.c.0.s8 %v830
    %v832 = vlaneseq
    %v833 = vshrl.u32 %v832, 7
    %v834 = vsub.s32 %v831, %v833
    %v835 = vrot.slane %v827, %v834
    %v837 = vunpack.c.l.s4 1966171168
    %v838 = vunpack.c.0.s8 %v837
    %v839 = vlaneseq
    %v840 = vshrl.u32 %v839, 7
    %v841 = vsub.s32 %v838, %v840
    %v842 = vrot.slane %v828, %v841
    %v843 = vlaneseq
    %v844 = vshrl.u32 %v843, 7
    %v845 = vsub.s32 0, %v844
    %v846 = vrot.slane %v835, %v845
    %v847 = vlaneseq
    %v848 = vshrl.u32 %v847, 7
    %v849 = vsub.s32 0, %v848
    %v850 = vrot.slane %v842, %v849
    %v853 = vsub.f32 %v716, %v846
    %v854 = vsub.f32 %v717, %v850
    %vm855 = vcmp.gt.f32.partialorder %v853, 0.0
    %vm856 = vcmp.gt.f32.partialorder %v854, 0.0
    %v857 = vmin.f32 %v853, 0.0
    %v858 = vmin.f32 %v854, 0.0
    %v859 = vmul.f32 %v857, 1.442695
    %v860 = vpow.pop %v859
    %v861 = vmul.f32 %v858, 1.442695
    %v862 = vpow.pop %v861
    %v863 = vsub.f32 %v860, 1.0
    %v864 = vsub.f32 %v862, 1.0
    %v865 = vsel %vm855, %v853, %v863
    %v866 = vsel %vm856, %v854, %v864
    %v867 = vrot.slane %v865, 4
    %v868 = vadd.f32 %v865, %v867
    %v869 = vrot.slane %v868, 2
    %v870 = vadd.f32 %v868, %v869
    %v871 = vrot.slane %v870, 1
    %v872 = vadd.f32 %v870, %v871
    %v873 = vrot.slane %v866, 4
    %v874 = vadd.f32 %v866, %v873
    %v875 = vrot.slane %v874, 2
    %v876 = vadd.f32 %v874, %v875
    %v877 = vrot.slane %v876, 1
    %v878 = vadd.f32 %v876, %v877
    %v879 = vrcp.pop 8.0
    %v880 = vmul.f32 %v872, %v879
    %v881 = vmul.f32 %v878, %v879
    %v882 = vld [vmem:[#allocation10] sm:$0xff]
    %v883 = vld [vmem:[#allocation10 + $0x8] sm:$0xff]
    %v884 = vld [vmem:[#allocation10 + $0x10] sm:$0xff]
    %v885 = vld [vmem:[#allocation10 + $0x18] sm:$0xff]
    %v886 = vld [vmem:[#allocation10 + $0x20] sm:$0xff]
    %v887 = vld [vmem:[#allocation10 + $0x28] sm:$0xff]
    %v888 = vld [vmem:[#allocation10 + $0x30] sm:$0xff]
    %v889 = vld [vmem:[#allocation10 + $0x38] sm:$0xff]
    %v890 = vld [vmem:[#allocation10 + $0x40] sm:$0xff]
    %v891 = vld [vmem:[#allocation10 + $0x48] sm:$0xff]
    %v892 = vld [vmem:[#allocation10 + $0x50] sm:$0xff]
    %v893 = vld [vmem:[#allocation10 + $0x58] sm:$0xff]
    %v894 = vld [vmem:[#allocation10 + $0x60] sm:$0xff]
    %v895 = vld [vmem:[#allocation10 + $0x68] sm:$0xff]
    %v896 = vld [vmem:[#allocation10 + $0x70] sm:$0xff]
    %v897 = vld [vmem:[#allocation10 + $0x78] sm:$0xff]
    %v898 = vld [vmem:[%s11] sm:$0x1]
    %v900 = vlaneseq
    %v901 = vshrl.u32 %v900, 7
    %v902 = vsub.s32 0, %v901
    %v903 = vrot.slane %v898, %v902
    %v907 = vsel %vm245, %v881, %v880
    %909 = vmatprep.subr.mxu0 0.0
    %910 = vmatpush1.msra.mxu0 %v882
    %911 = vmatprep.subr.mxu0 0.0
    %912 = vmatpush1.msra.mxu0 %v883
    %913 = vmatprep.subr.mxu0 0.0
    %914 = vmatpush1.msra.mxu0 %v884
    %915 = vmatprep.subr.mxu0 0.0
    %916 = vmatpush1.msra.mxu0 %v885
    %917 = vmatprep.subr.mxu0 0.0
    %918 = vmatpush1.msra.mxu0 %v886
    %919 = vmatprep.subr.mxu0 0.0
    %920 = vmatpush1.msra.mxu0 %v887
    %921 = vmatprep.subr.mxu0 0.0
    %922 = vmatpush1.msra.mxu0 %v888
    %923 = vmatprep.subr.mxu0 0.0
    %924 = vmatpush1.msra.mxu0 %v889
    %925 = vmatprep.subr.mxu0 0.0
    %926 = vmatpush1.msra.mxu0 %v890
    %927 = vmatprep.subr.mxu0 0.0
    %928 = vmatpush1.msra.mxu0 %v891
    %929 = vmatprep.subr.mxu0 0.0
    %930 = vmatpush1.msra.mxu0 %v892
    %931 = vmatprep.subr.mxu0 0.0
    %932 = vmatpush1.msra.mxu0 %v893
    %933 = vmatprep.subr.mxu0 0.0
    %934 = vmatpush1.msra.mxu0 %v894
    %935 = vmatprep.subr.mxu0 0.0
    %936 = vmatpush1.msra.mxu0 %v895
    %937 = vmatprep.subr.mxu0 0.0
    %938 = vmatpush1.msra.mxu0 %v896
    %939 = vmatprep.subr.mxu0 0.0
    %940 = vmatpush1.msra.mxu0 %v897
    %941 = vmatprep.subr.mxu0 0.0
    %942 = vmatpush1.msra.mxu0 0.0
    %943 = vmatprep.subr.mxu0 0.0
    %944 = vmatpush1.msra.mxu0 0.0
    %945 = vmatprep.subr.mxu0 0.0
    %946 = vmatpush1.msra.mxu0 0.0
    %947 = vmatprep.subr.mxu0 0.0
    %948 = vmatpush1.msra.mxu0 0.0
    %949 = vmatprep.subr.mxu0 0.0
    %950 = vmatpush1.msra.mxu0 0.0
    %951 = vmatprep.subr.mxu0 0.0
    %952 = vmatpush1.msra.mxu0 0.0
    %953 = vmatprep.subr.mxu0 0.0
    %954 = vmatpush1.msra.mxu0 0.0
    %955 = vmatprep.subr.mxu0 0.0
    %956 = vmatpush1.msra.mxu0 0.0
    %957 = vmatprep.subr.mxu0 0.0
    %958 = vmatpush1.msra.mxu0 0.0
    %959 = vmatprep.subr.mxu0 0.0
    %960 = vmatpush1.msra.mxu0 0.0
    %961 = vmatprep.subr.mxu0 0.0
    %962 = vmatpush1.msra.mxu0 0.0
    %963 = vmatprep.subr.mxu0 0.0
    %964 = vmatpush1.msra.mxu0 0.0
    %965 = vmatprep.subr.mxu0 0.0
    %966 = vmatpush1.msra.mxu0 0.0
    %967 = vmatprep.subr.mxu0 0.0
    %968 = vmatpush1.msra.mxu0 0.0
    %969 = vmatprep.subr.mxu0 0.0
    %970 = vmatpush1.msra.mxu0 0.0
    %971 = vmatprep.subr.mxu0 0.0
    %972 = vmatpush1.msra.mxu0 0.0
    %973 = vmatprep.mubr.f32.mxu0 0.0
    %974 = vmatmul.mubr.f32.gmra.mrb[0].mxu0 %v907
    %v975 = vpop.f32.mrb[0].mxu0
    %v976 = vadd.f32 %v903, %v975
    %v977 = vpop.f32.mrb[0].mxu0
    %978 = vdwg.mxu0
    %vm979 = vcmp.gt.f32.partialorder %v976, 0.0
    %v980 = vmin.f32 %v976, 0.0
    %v981 = vmul.f32 %v980, 1.442695
    %v982 = vpow.pop %v981
    %v983 = vsub.f32 %v982, 1.0
    %v984 = vsel %vm979, %v976, %v983
    %v985 = vld [vmem:[#allocation11] sm:$0xff]
    %v986 = vld [vmem:[#allocation11 + $0x8] sm:$0xff]
    %v987 = vld [vmem:[#allocation11 + $0x10] sm:$0xff]
    %v988 = vld [vmem:[#allocation11 + $0x18] sm:$0xff]
    %v989 = vld [vmem:[#allocation11 + $0x20] sm:$0xff]
    %v990 = vld [vmem:[#allocation11 + $0x28] sm:$0xff]
    %v991 = vld [vmem:[#allocation11 + $0x30] sm:$0xff]
    %v992 = vld [vmem:[#allocation11 + $0x38] sm:$0xff]
    %v993 = vld [vmem:[#allocation11 + $0x40] sm:$0xff]
    %v994 = vld [vmem:[#allocation11 + $0x48] sm:$0xff]
    %v995 = vld [vmem:[#allocation11 + $0x50] sm:$0xff]
    %v996 = vld [vmem:[#allocation11 + $0x58] sm:$0xff]
    %v997 = vld [vmem:[#allocation11 + $0x60] sm:$0xff]
    %v998 = vld [vmem:[#allocation11 + $0x68] sm:$0xff]
    %v999 = vld [vmem:[#allocation11 + $0x70] sm:$0xff]
    %v1000 = vld [vmem:[#allocation11 + $0x78] sm:$0xff]
    %v1001 = vld [vmem:[%s13] sm:$0x1]
    %v1003 = vlaneseq
    %v1004 = vshrl.u32 %v1003, 7
    %v1005 = vsub.s32 0, %v1004
    %v1006 = vrot.slane %v1001, %v1005
    %1008 = vmatprep.subr.mxu0 0.0
    %1009 = vmatpush1.msra.mxu0 %v985
    %1010 = vmatprep.subr.mxu0 0.0
    %1011 = vmatpush1.msra.mxu0 %v986
    %1012 = vmatprep.subr.mxu0 0.0
    %1013 = vmatpush1.msra.mxu0 %v987
    %1014 = vmatprep.subr.mxu0 0.0
    %1015 = vmatpush1.msra.mxu0 %v988
    %1016 = vmatprep.subr.mxu0 0.0
    %1017 = vmatpush1.msra.mxu0 %v989
    %1018 = vmatprep.subr.mxu0 0.0
    %1019 = vmatpush1.msra.mxu0 %v990
    %1020 = vmatprep.subr.mxu0 0.0
    %1021 = vmatpush1.msra.mxu0 %v991
    %1022 = vmatprep.subr.mxu0 0.0
    %1023 = vmatpush1.msra.mxu0 %v992
    %1024 = vmatprep.subr.mxu0 0.0
    %1025 = vmatpush1.msra.mxu0 %v993
    %1026 = vmatprep.subr.mxu0 0.0
    %1027 = vmatpush1.msra.mxu0 %v994
    %1028 = vmatprep.subr.mxu0 0.0
    %1029 = vmatpush1.msra.mxu0 %v995
    %1030 = vmatprep.subr.mxu0 0.0
    %1031 = vmatpush1.msra.mxu0 %v996
    %1032 = vmatprep.subr.mxu0 0.0
    %1033 = vmatpush1.msra.mxu0 %v997
    %1034 = vmatprep.subr.mxu0 0.0
    %1035 = vmatpush1.msra.mxu0 %v998
    %1036 = vmatprep.subr.mxu0 0.0
    %1037 = vmatpush1.msra.mxu0 %v999
    %1038 = vmatprep.subr.mxu0 0.0
    %1039 = vmatpush1.msra.mxu0 %v1000
    %1040 = vmatprep.subr.mxu0 0.0
    %1041 = vmatpush1.msra.mxu0 0.0
    %1042 = vmatprep.subr.mxu0 0.0
    %1043 = vmatpush1.msra.mxu0 0.0
    %1044 = vmatprep.subr.mxu0 0.0
    %1045 = vmatpush1.msra.mxu0 0.0
    %1046 = vmatprep.subr.mxu0 0.0
    %1047 = vmatpush1.msra.mxu0 0.0
    %1048 = vmatprep.subr.mxu0 0.0
    %1049 = vmatpush1.msra.mxu0 0.0
    %1050 = vmatprep.subr.mxu0 0.0
    %1051 = vmatpush1.msra.mxu0 0.0
    %1052 = vmatprep.subr.mxu0 0.0
    %1053 = vmatpush1.msra.mxu0 0.0
    %1054 = vmatprep.subr.mxu0 0.0
    %1055 = vmatpush1.msra.mxu0 0.0
    %1056 = vmatprep.subr.mxu0 0.0
    %1057 = vmatpush1.msra.mxu0 0.0
    %1058 = vmatprep.subr.mxu0 0.0
    %1059 = vmatpush1.msra.mxu0 0.0
    %1060 = vmatprep.subr.mxu0 0.0
    %1061 = vmatpush1.msra.mxu0 0.0
    %1062 = vmatprep.subr.mxu0 0.0
    %1063 = vmatpush1.msra.mxu0 0.0
    %1064 = vmatprep.subr.mxu0 0.0
    %1065 = vmatpush1.msra.mxu0 0.0
    %1066 = vmatprep.subr.mxu0 0.0
    %1067 = vmatpush1.msra.mxu0 0.0
    %1068 = vmatprep.subr.mxu0 0.0
    %1069 = vmatpush1.msra.mxu0 0.0
    %1070 = vmatprep.subr.mxu0 0.0
    %1071 = vmatpush1.msra.mxu0 0.0
    %1072 = vmatprep.mubr.f32.mxu0 0.0
    %1073 = vmatmul.mubr.f32.gmra.mrb[0].mxu0 %v984
    %v1074 = vpop.f32.mrb[0].mxu0
    %v1075 = vadd.f32 %v1006, %v1074
    %v1076 = vpop.f32.mrb[0].mxu0
    %1077 = vdwg.mxu0
    %1078 = vst [vmem:[#allocation13] sm:$0x3] %v1075
    // Predicated region
    $region82: #{tpu_custom_call.1} parent=1 // pred_check
      _
    $region83: #{tpu_custom_call.1} parent=1 // pred_check_branch
      %1080 = sbr.rel (0) target = $region85
    $region84: #{tpu_custom_call.1} parent=1 // pred_region
      %s1082 = ssub.s32 32, 32
      %1083 = vsyncadd [#allocation4], %s1082
      %s1085 = sshll.u32 [#allocation13], 4
      %s1086 = int_to_ptr.vmem [resolvable:$true] %s1085
      %1088 = dma.vmem_to_hbm [thread:$0]  %s1086, 32, %s14, [#allocation4]
    $region85: #{tpu_custom_call.1} parent=1 // pred_fallthru
      _
    // Predicated region
    $region86: #{tpu_custom_call.1} parent=1 // pred_check
      _
    $region87: #{tpu_custom_call.1} parent=1 // pred_check_branch
      %1090 = sbr.rel (0) target = $region89
    $region88: #{tpu_custom_call.1} parent=1 // pred_region
      %1091 = dma.done [#allocation4], 32
    $region89: #{tpu_custom_call.1} parent=1 // pred_fallthru
      _
    %1092 = vsyncpa [#allocation3], 1
    %1093 = vsyncpa [#allocation6], 1
    %1094 = vsyncpa [#allocation9], 1
    %1095 = vsyncpa [#allocation12], 1
    %1096 = vsyncpa [#allocation4], 1

// kernel: tpu_custom_call.1
$region0: #{tpu_custom_call.1}
  #allocation0 [shape = 'u32[]', space=smem, size = 0x4, offset = 0x4, fixed_abs, tag = 'smem constant byte address 0x4 - core index']
  #allocation1 [shape = 'u32[144,128]{1,0:T(1,128)}', space=vmem, size = 0x12000, scoped, tag = 'internal scratch']
  %s0 = inlined_call_operand.vmem [shape: f32[2,8,3], index: 0, kind: input, shape index: {}]
  %s1 = inlined_call_operand.vmem [shape: f32[3,128], index: 1, kind: input, shape index: {}]
  %s2 = inlined_call_operand.vmem [shape: f32[1,128], index: 2, kind: input, shape index: {}]
  %s3 = inlined_call_operand.vmem [shape: f32[3,128], index: 3, kind: input, shape index: {}]
  %s4 = inlined_call_operand.hbm [shape: f32[128,128], index: 4, kind: input, shape index: {}]
  %s5 = inlined_call_operand.vmem [shape: f32[1,128], index: 5, kind: input, shape index: {}]
  %s6 = inlined_call_operand.hbm [shape: f32[128,128], index: 6, kind: input, shape index: {}]
  %s7 = inlined_call_operand.hbm [shape: f32[128,128], index: 7, kind: input, shape index: {}]
  %s8 = inlined_call_operand.vmem [shape: f32[1,128], index: 8, kind: input, shape index: {}]
  %s9 = inlined_call_operand.hbm [shape: f32[128,128], index: 9, kind: input, shape index: {}]
  %s10 = inlined_call_operand.hbm [shape: f32[128,128], index: 10, kind: input, shape index: {}]
  %s11 = inlined_call_operand.vmem [shape: f32[1,128], index: 11, kind: input, shape index: {}]
  %s12 = inlined_call_operand.hbm [shape: f32[128,128], index: 12, kind: input, shape index: {}]
  %s13 = inlined_call_operand.vmem [shape: f32[1,128], index: 13, kind: input, shape index: {}]
  %s14 = inlined_call_operand.hbm [shape: f32[2,128], index: 14, kind: output, shape index: {}]
  %s15 = sld [smem:[#allocation0]]
  $region90: #{tpu_custom_call.1} parent=0
    _
  %s17 = ssub.s32 1, %s15
  %s18 = scalar_select 0, %s17, %s15
  $region1: #{tpu_custom_call.1} parent=0
    #allocation2 [shape = 'u8[65536]{0}', space=vmem, size = 0x10000, scoped, tag = 'input window, operand 4, single buffered']
    #allocation3 [shape = 's32[1]{0}', space=sflag, size = 0x4, scoped, tag = 'scoped memory for tpu_custom_call.1']
    #allocation4 [shape = 's32[1]{0}', space=sflag, size = 0x4, scoped, tag = 'scoped memory for tpu_custom_call.1']
    #allocation5 [shape = 'u8[65536]{0}', space=vmem, size = 0x10000, scoped, tag = 'input window, operand 6, single buffered']
    #allocation6 [shape = 's32[1]{0}', space=sflag, size = 0x4, scoped, tag = 'scoped memory for tpu_custom_call.1']
    #allocation7 [shape = 'u8[65536]{0}', space=vmem, size = 0x10000, scoped, tag = 'input window, operand 7, single buffered']
    #allocation8 [shape = 'u8[65536]{0}', space=vmem, size = 0x10000, scoped, tag = 'input window, operand 9, single buffered']
    #allocation9 [shape = 's32[1]{0}', space=sflag, size = 0x4, scoped, tag = 'scoped memory for tpu_custom_call.1']
    #allocation10 [shape = 'u8[65536]{0}', space=vmem, size = 0x10000, scoped, tag = 'input window, operand 10, single buffered']
    #allocation11 [shape = 'u8[65536]{0}', space=vmem, size = 0x10000, scoped, tag = 'input window, operand 12, single buffered']
    #allocation12 [shape = 's32[1]{0}', space=sflag, size = 0x4, scoped, tag = 'scoped memory for tpu_custom_call.1']
    #allocation13 [shape = 'u8[1024]{0}', space=vmem, size = 0x400, scoped, tag = 'output window, operand 0, single buffered']
    %19 = vsyncpa [#allocation3], 0
    %20 = vsyncpa [#allocation6], 0
    %21 = vsyncpa [#allocation9], 0
    %22 = vsyncpa [#allocation12], 0
    %23 = vsyncpa [#allocation4], 0
    // Predicated region
    $region2: #{tpu_custom_call.1} parent=1 // pred_check
      _
    $region3: #{tpu_custom_call.1} parent=1 // pred_check_branch
      %25 = sbr.rel (0) target = $region5
    $region4: #{tpu_custom_call.1} parent=1 // pred_region
      _
    $region5: #{tpu_custom_call.1} parent=1 // pred_fallthru
      _
    // Predicated region
    $region6: #{tpu_custom_call.1} parent=1 // pred_check
      _
    $region7: #{tpu_custom_call.1} parent=1 // pred_check_branch
      %27 = sbr.rel (0) target = $region9
    $region8: #{tpu_custom_call.1} parent=1 // pred_region
      _
    $region9: #{tpu_custom_call.1} parent=1 // pred_fallthru
      _
    // Predicated region
    $region10: #{tpu_custom_call.1} parent=1 // pred_check
      _
    $region11: #{tpu_custom_call.1} parent=1 // pred_check_branch
      %29 = sbr.rel (0) target = $region13
    $region12: #{tpu_custom_call.1} parent=1 // pred_region
      _
    $region13: #{tpu_custom_call.1} parent=1 // pred_fallthru
      _
    // Predicated region
    $region14: #{tpu_custom_call.1} parent=1 // pred_check
      _
    $region15: #{tpu_custom_call.1} parent=1 // pred_check_branch
      %31 = sbr.rel (0) target = $region17
    $region16: #{tpu_custom_call.1} parent=1 // pred_region
      _
    $region17: #{tpu_custom_call.1} parent=1 // pred_fallthru
      _
    // Predicated region
    $region18: #{tpu_custom_call.1} parent=1 // pred_check
      _
    $region19: #{tpu_custom_call.1} parent=1 // pred_check_branch
      %33 = sbr.rel (0) target = $region21
    $region20: #{tpu_custom_call.1} parent=1 // pred_region
      %s35 = ssub.s32 2048, 2048
      %36 = vsyncadd [#allocation3], %s35
      %s37 = sshll.u32 [#allocation2], 4
      %s38 = int_to_ptr.vmem [resolvable:$true] %s37
      %43 = dma.hbm_to_vmem [thread:$0]  %s4, 2048, %s38, [#allocation3], 128, 128, 8
    $region21: #{tpu_custom_call.1} parent=1 // pred_fallthru
      _
    // Predicated region
    $region22: #{tpu_custom_call.1} parent=1 // pred_check
      _
    $region23: #{tpu_custom_call.1} parent=1 // pred_check_branch
      %45 = sbr.rel (0) target = $region25
    $region24: #{tpu_custom_call.1} parent=1 // pred_region
      _
    $region25: #{tpu_custom_call.1} parent=1 // pred_fallthru
      _
    // Predicated region
    $region26: #{tpu_custom_call.1} parent=1 // pred_check
      _
    $region27: #{tpu_custom_call.1} parent=1 // pred_check_branch
      %47 = sbr.rel (0) target = $region29
    $region28: #{tpu_custom_call.1} parent=1 // pred_region
      %s49 = ssub.s32 2048, 2048
      %50 = vsyncadd [#allocation6], %s49
      %s51 = sshll.u32 [#allocation5], 4
      %s52 = int_to_ptr.vmem [resolvable:$true] %s51
      %57 = dma.hbm_to_vmem [thread:$0]  %s6, 2048, %s52, [#allocation6], 128, 128, 8
    $region29: #{tpu_custom_call.1} parent=1 // pred_fallthru
      _
    // Predicated region
    $region30: #{tpu_custom_call.1} parent=1 // pred_check
      _
    $region31: #{tpu_custom_call.1} parent=1 // pred_check_branch
      %59 = sbr.rel (0) target = $region33
    $region32: #{tpu_custom_call.1} parent=1 // pred_region
      %s61 = ssub.s32 2048, 2048
      %62 = vsyncadd [#allocation6], %s61
      %s63 = sshll.u32 [#allocation7], 4
      %s64 = int_to_ptr.vmem [resolvable:$true] %s63
      %69 = dma.hbm_to_vmem [thread:$0]  %s7, 2048, %s64, [#allocation6], 128, 128, 8
    $region33: #{tpu_custom_call.1} parent=1 // pred_fallthru
      _
    // Predicated region
    $region34: #{tpu_custom_call.1} parent=1 // pred_check
      _
    $region35: #{tpu_custom_call.1} parent=1 // pred_check_branch
      %71 = sbr.rel (0) target = $region37
    $region36: #{tpu_custom_call.1} parent=1 // pred_region
      _
    $region37: #{tpu_custom_call.1} parent=1 // pred_fallthru
      _
    // Predicated region
    $region38: #{tpu_custom_call.1} parent=1 // pred_check
      _
    $region39: #{tpu_custom_call.1} parent=1 // pred_check_branch
      %73 = sbr.rel (0) target = $region41
    $region40: #{tpu_custom_call.1} parent=1 // pred_region
      %s75 = ssub.s32 2048, 2048
      %76 = vsyncadd [#allocation9], %s75
      %s77 = sshll.u32 [#allocation8], 4
      %s78 = int_to_ptr.vmem [resolvable:$true] %s77
      %83 = dma.hbm_to_vmem [thread:$0]  %s9, 2048, %s78, [#allocation9], 128, 128, 8
    $region41: #{tpu_custom_call.1} parent=1 // pred_fallthru
      _
    // Predicated region
    $region42: #{tpu_custom_call.1} parent=1 // pred_check
      _
    $region43: #{tpu_custom_call.1} parent=1 // pred_check_branch
      %85 = sbr.rel (0) target = $region45
    $region44: #{tpu_custom_call.1} parent=1 // pred_region
      %s87 = ssub.s32 2048, 2048
      %88 = vsyncadd [#allocation9], %s87
      %s89 = sshll.u32 [#allocation10], 4
      %s90 = int_to_ptr.vmem [resolvable:$true] %s89
      %95 = dma.hbm_to_vmem [thread:$0]  %s10, 2048, %s90, [#allocation9], 128, 128, 8
    $region45: #{tpu_custom_call.1} parent=1 // pred_fallthru
      _
    // Predicated region
    $region46: #{tpu_custom_call.1} parent=1 // pred_check
      _
    $region47: #{tpu_custom_call.1} parent=1 // pred_check_branch
      %97 = sbr.rel (0) target = $region49
    $region48: #{tpu_custom_call.1} parent=1 // pred_region
      _
    $region49: #{tpu_custom_call.1} parent=1 // pred_fallthru
      _
    // Predicated region
    $region50: #{tpu_custom_call.1} parent=1 // pred_check
      _
    $region51: #{tpu_custom_call.1} parent=1 // pred_check_branch
      %99 = sbr.rel (0) target = $region53
    $region52: #{tpu_custom_call.1} parent=1 // pred_region
      %s101 = ssub.s32 2048, 2048
      %102 = vsyncadd [#allocation12], %s101
      %s103 = sshll.u32 [#allocation11], 4
      %s104 = int_to_ptr.vmem [resolvable:$true] %s103
      %109 = dma.hbm_to_vmem [thread:$0]  %s12, 2048, %s104, [#allocation12], 128, 128, 8
    $region53: #{tpu_custom_call.1} parent=1 // pred_fallthru
      _
    // Predicated region
    $region54: #{tpu_custom_call.1} parent=1 // pred_check
      _
    $region55: #{tpu_custom_call.1} parent=1 // pred_check_branch
      %111 = sbr.rel (0) target = $region57
    $region56: #{tpu_custom_call.1} parent=1 // pred_region
      _
    $region57: #{tpu_custom_call.1} parent=1 // pred_fallthru
      _
    // Predicated region
    $region58: #{tpu_custom_call.1} parent=1 // pred_check
      _
    $region59: #{tpu_custom_call.1} parent=1 // pred_check_branch
      %113 = sbr.rel (0) target = $region61
    $region60: #{tpu_custom_call.1} parent=1 // pred_region
      %114 = dma.done [#allocation3], 2048
    $region61: #{tpu_custom_call.1} parent=1 // pred_fallthru
      _
    // Predicated region
    $region62: #{tpu_custom_call.1} parent=1 // pred_check
      _
    $region63: #{tpu_custom_call.1} parent=1 // pred_check_branch
      %116 = sbr.rel (0) target = $region65
    $region64: #{tpu_custom_call.1} parent=1 // pred_region
      %117 = dma.done [#allocation6], 2048
    $region65: #{tpu_custom_call.1} parent=1 // pred_fallthru
      _
    // Predicated region
    $region66: #{tpu_custom_call.1} parent=1 // pred_check
      _
    $region67: #{tpu_custom_call.1} parent=1 // pred_check_branch
      %119 = sbr.rel (0) target = $region69
    $region68: #{tpu_custom_call.1} parent=1 // pred_region
      %120 = dma.done [#allocation6], 2048
    $region69: #{tpu_custom_call.1} parent=1 // pred_fallthru
      _
    // Predicated region
    $region70: #{tpu_custom_call.1} parent=1 // pred_check
      _
    $region71: #{tpu_custom_call.1} parent=1 // pred_check_branch
      %122 = sbr.rel (0) target = $region73
    $region72: #{tpu_custom_call.1} parent=1 // pred_region
      %123 = dma.done [#allocation9], 2048
    $region73: #{tpu_custom_call.1} parent=1 // pred_fallthru
      _
    // Predicated region
    $region74: #{tpu_custom_call.1} parent=1 // pred_check
      _
    $region75: #{tpu_custom_call.1} parent=1 // pred_check_branch
      %125 = sbr.rel (0) target = $region77
    $region76: #{tpu_custom_call.1} parent=1 // pred_region
      %126 = dma.done [#allocation9], 2048
    $region77: #{tpu_custom_call.1} parent=1 // pred_fallthru
      _
    // Predicated region
    $region78: #{tpu_custom_call.1} parent=1 // pred_check
      _
    $region79: #{tpu_custom_call.1} parent=1 // pred_check_branch
      %128 = sbr.rel (0) target = $region81
    $region80: #{tpu_custom_call.1} parent=1 // pred_region
      %129 = dma.done [#allocation12], 2048
    $region81: #{tpu_custom_call.1} parent=1 // pred_fallthru
      _
    %v130 = vld [vmem:[%s0] sm:$0xff]
    %v131 = vld [vmem:[%s0 + $0x8] sm:$0xff]
    %v132 = vld [vmem:[%s1] sm:$0x7]
    %vm133 = vcmask 23552
    %v135 = vsel %vm133, %v130, 0
    %v138 = vsel %vm133, %v131, 0
    %vm140 = vcmask 1042432
    %v142 = vsel %vm140, %v132, 0
    %144 = vmatprep.subr.mxu0 0.0
    %145 = vmatpush1.msra.mxu0 %v142
    %146 = vmatprep.subr.mxu0 0.0
    %147 = vmatpush1.msra.mxu0 0.0
    %148 = vmatprep.subr.mxu0 0.0
    %149 = vmatpush1.msra.mxu0 0.0
    %150 = vmatprep.subr.mxu0 0.0
    %151 = vmatpush1.msra.mxu0 0.0
    %152 = vmatprep.subr.mxu0 0.0
    %153 = vmatpush1.msra.mxu0 0.0
    %154 = vmatprep.subr.mxu0 0.0
    %155 = vmatpush1.msra.mxu0 0.0
    %156 = vmatprep.subr.mxu0 0.0
    %157 = vmatpush1.msra.mxu0 0.0
    %158 = vmatprep.subr.mxu0 0.0
    %159 = vmatpush1.msra.mxu0 0.0
    %160 = vmatprep.subr.mxu0 0.0
    %161 = vmatpush1.msra.mxu0 0.0
    %162 = vmatprep.subr.mxu0 0.0
    %163 = vmatpush1.msra.mxu0 0.0
    %164 = vmatprep.subr.mxu0 0.0
    %165 = vmatpush1.msra.mxu0 0.0
    %166 = vmatprep.subr.mxu0 0.0
    %167 = vmatpush1.msra.mxu0 0.0
    %168 = vmatprep.subr.mxu0 0.0
    %169 = vmatpush1.msra.mxu0 0.0
    %170 = vmatprep.subr.mxu0 0.0
    %171 = vmatpush1.msra.mxu0 0.0
    %172 = vmatprep.subr.mxu0 0.0
    %173 = vmatpush1.msra.mxu0 0.0
    %174 = vmatprep.subr.mxu0 0.0
    %175 = vmatpush1.msra.mxu0 0.0
    %176 = vmatprep.subr.mxu0 0.0
    %177 = vmatpush1.msra.mxu0 0.0
    %178 = vmatprep.subr.mxu0 0.0
    %179 = vmatpush1.msra.mxu0 0.0
    %180 = vmatprep.subr.mxu0 0.0
    %181 = vmatpush1.msra.mxu0 0.0
    %182 = vmatprep.subr.mxu0 0.0
    %183 = vmatpush1.msra.mxu0 0.0
    %184 = vmatprep.subr.mxu0 0.0
    %185 = vmatpush1.msra.mxu0 0.0
    %186 = vmatprep.subr.mxu0 0.0
    %187 = vmatpush1.msra.mxu0 0.0
    %188 = vmatprep.subr.mxu0 0.0
    %189 = vmatpush1.msra.mxu0 0.0
    %190 = vmatprep.subr.mxu0 0.0
    %191 = vmatpush1.msra.mxu0 0.0
    %192 = vmatprep.subr.mxu0 0.0
    %193 = vmatpush1.msra.mxu0 0.0
    %194 = vmatprep.subr.mxu0 0.0
    %195 = vmatpush1.msra.mxu0 0.0
    %196 = vmatprep.subr.mxu0 0.0
    %197 = vmatpush1.msra.mxu0 0.0
    %198 = vmatprep.subr.mxu0 0.0
    %199 = vmatpush1.msra.mxu0 0.0
    %200 = vmatprep.subr.mxu0 0.0
    %201 = vmatpush1.msra.mxu0 0.0
    %202 = vmatprep.subr.mxu0 0.0
    %203 = vmatpush1.msra.mxu0 0.0
    %204 = vmatprep.subr.mxu0 0.0
    %205 = vmatpush1.msra.mxu0 0.0
    %206 = vmatprep.subr.mxu0 0.0
    %207 = vmatpush1.msra.mxu0 0.0
    %208 = vmatprep.mubr.f32.mxu0 0.0
    %209 = vmatmul.mubr.f32.gmra.mrb[0].mxu0 %v135
    %v210 = vpop.f32.mrb[0].mxu0
    %v211 = vadd.f32 0.0, %v210
    %v212 = vpop.f32.mrb[0].mxu0
    %213 = vmatprep.mubr.f32.mxu0 0.0
    %214 = vmatmul.mubr.f32.gmra.mrb[0].mxu0 %v138
    %v215 = vpop.f32.mrb[0].mxu0
    %v216 = vadd.f32 0.0, %v215
    %v217 = vpop.f32.mrb[0].mxu0
    %218 = vdwg.mxu0
    %v219 = vld [vmem:[%s2] sm:$0x1]
    %v221 = vlaneseq
    %v222 = vshrl.u32 %v221, 7
    %v223 = vsub.s32 0, %v222
    %v224 = vrot.slane %v219, %v223
    %v226 = vadd.f32 %v211, %v224
    %v227 = vadd.f32 %v216, %v224
    %v228 = vsel %vm133, %v130, 0.0
    %v229 = vrot.slane %v228, 4
    %v230 = vadd.f32 %v228, %v229
    %v231 = vrot.slane %v230, 2
    %v232 = vadd.f32 %v230, %v231
    %v233 = vrot.slane %v232, 1
    %v234 = vadd.f32 %v232, %v233
    %v235 = vsel %vm133, %v131, 0.0
    %v236 = vrot.slane %v235, 4
    %v237 = vadd.f32 %v235, %v236
    %v238 = vrot.slane %v237, 2
    %v239 = vadd.f32 %v237, %v238
    %v240 = vrot.slane %v239, 1
    %v241 = vadd.f32 %v239, %v240
    %v242 = vld [vmem:[%s3] sm:$0x7]
    %vm245 = vcmask 1041409
    %v246 = vsel %vm245, %v241, %v234
    %v247 = vsel %vm133, %v246, 0
    %v250 = vsel %vm140, %v242, 0
    %252 = vmatprep.subr.mxu0 0.0
    %253 = vmatpush1.msra.mxu0 %v250
    %254 = vmatprep.subr.mxu0 0.0
    %255 = vmatpush1.msra.mxu0 0.0
    %256 = vmatprep.subr.mxu0 0.0
    %257 = vmatpush1.msra.mxu0 0.0
    %258 = vmatprep.subr.mxu0 0.0
    %259 = vmatpush1.msra.mxu0 0.0
    %260 = vmatprep.subr.mxu0 0.0
    %261 = vmatpush1.msra.mxu0 0.0
    %262 = vmatprep.subr.mxu0 0.0
    %263 = vmatpush1.msra.mxu0 0.0
    %264 = vmatprep.subr.mxu0 0.0
    %265 = vmatpush1.msra.mxu0 0.0
    %266 = vmatprep.subr.mxu0 0.0
    %267 = vmatpush1.msra.mxu0 0.0
    %268 = vmatprep.subr.mxu0 0.0
    %269 = vmatpush1.msra.mxu0 0.0
    %270 = vmatprep.subr.mxu0 0.0
    %271 = vmatpush1.msra.mxu0 0.0
    %272 = vmatprep.subr.mxu0 0.0
    %273 = vmatpush1.msra.mxu0 0.0
    %274 = vmatprep.subr.mxu0 0.0
    %275 = vmatpush1.msra.mxu0 0.0
    %276 = vmatprep.subr.mxu0 0.0
    %277 = vmatpush1.msra.mxu0 0.0
    %278 = vmatprep.subr.mxu0 0.0
    %279 = vmatpush1.msra.mxu0 0.0
    %280 = vmatprep.subr.mxu0 0.0
    %281 = vmatpush1.msra.mxu0 0.0
    %282 = vmatprep.subr.mxu0 0.0
    %283 = vmatpush1.msra.mxu0 0.0
    %284 = vmatprep.subr.mxu0 0.0
    %285 = vmatpush1.msra.mxu0 0.0
    %286 = vmatprep.subr.mxu0 0.0
    %287 = vmatpush1.msra.mxu0 0.0
    %288 = vmatprep.subr.mxu0 0.0
    %289 = vmatpush1.msra.mxu0 0.0
    %290 = vmatprep.subr.mxu0 0.0
    %291 = vmatpush1.msra.mxu0 0.0
    %292 = vmatprep.subr.mxu0 0.0
    %293 = vmatpush1.msra.mxu0 0.0
    %294 = vmatprep.subr.mxu0 0.0
    %295 = vmatpush1.msra.mxu0 0.0
    %296 = vmatprep.subr.mxu0 0.0
    %297 = vmatpush1.msra.mxu0 0.0
    %298 = vmatprep.subr.mxu0 0.0
    %299 = vmatpush1.msra.mxu0 0.0
    %300 = vmatprep.subr.mxu0 0.0
    %301 = vmatpush1.msra.mxu0 0.0
    %302 = vmatprep.subr.mxu0 0.0
    %303 = vmatpush1.msra.mxu0 0.0
    %304 = vmatprep.subr.mxu0 0.0
    %305 = vmatpush1.msra.mxu0 0.0
    %306 = vmatprep.subr.mxu0 0.0
    %307 = vmatpush1.msra.mxu0 0.0
    %308 = vmatprep.subr.mxu0 0.0
    %309 = vmatpush1.msra.mxu0 0.0
    %310 = vmatprep.subr.mxu0 0.0
    %311 = vmatpush1.msra.mxu0 0.0
    %312 = vmatprep.subr.mxu0 0.0
    %313 = vmatpush1.msra.mxu0 0.0
    %314 = vmatprep.subr.mxu0 0.0
    %315 = vmatpush1.msra.mxu0 0.0
    %316 = vmatprep.mubr.f32.mxu0 0.0
    %317 = vmatmul.mubr.f32.gmra.mrb[0].mxu0 %v247
    %v318 = vpop.f32.mrb[0].mxu0
    %v319 = vadd.f32 0.0, %v318
    %v320 = vpop.f32.mrb[0].mxu0
    %321 = vdwg.mxu0
    %v324 = vunpack.c.l.s4 1966171168
    %v325 = vunpack.c.0.s8 %v324
    %v326 = vlaneseq
    %v327 = vshrl.u32 %v326, 7
    %v328 = vsub.s32 %v325, %v327
    %v329 = vrot.slane %v319, %v328
    %v330 = vcombine.high %v329, %v329
    %v332 = vunpack.c.l.s4 1966171168
    %v333 = vunpack.c.0.s8 %v332
    %v334 = vlaneseq
    %v335 = vshrl.u32 %v334, 7
    %v336 = vsub.s32 %v333, %v335
    %v337 = vrot.slane %v329, %v336
    %v339 = vunpack.c.l.s4 1966171168
    %v340 = vunpack.c.0.s8 %v339
    %v341 = vlaneseq
    %v342 = vshrl.u32 %v341, 7
    %v343 = vsub.s32 %v340, %v342
    %v344 = vrot.slane %v330, %v343
    %v345 = vlaneseq
    %v346 = vshrl.u32 %v345, 7
    %v347 = vsub.s32 0, %v346
    %v348 = vrot.slane %v337, %v347
    %v349 = vlaneseq
    %v350 = vshrl.u32 %v349, 7
    %v351 = vsub.s32 0, %v350
    %v352 = vrot.slane %v344, %v351
    %v355 = vsub.f32 %v226, %v348
    %v356 = vsub.f32 %v227, %v352
    %vm357 = vcmp.gt.f32.partialorder %v355, 0.0
    %vm358 = vcmp.gt.f32.partialorder %v356, 0.0
    %v359 = vmin.f32 %v355, 0.0
    %v360 = vmin.f32 %v356, 0.0
    %v361 = vmul.f32 %v359, 1.442695
    %v362 = vpow.pop %v361
    %v363 = vmul.f32 %v360, 1.442695
    %v364 = vpow.pop %v363
    %v365 = vsub.f32 %v362, 1.0
    %v366 = vsub.f32 %v364, 1.0
    %v367 = vsel %vm357, %v355, %v365
    %v368 = vsel %vm358, %v356, %v366
    %v369 = vld [vmem:[#allocation2] sm:$0xff]
    %v370 = vld [vmem:[#allocation2 + $0x8] sm:$0xff]
    %v371 = vld [vmem:[#allocation2 + $0x10] sm:$0xff]
    %v372 = vld [vmem:[#allocation2 + $0x18] sm:$0xff]
    %v373 = vld [vmem:[#allocation2 + $0x20] sm:$0xff]
    %v374 = vld [vmem:[#allocation2 + $0x28] sm:$0xff]
    %v375 = vld [vmem:[#allocation2 + $0x30] sm:$0xff]
    %v376 = vld [vmem:[#allocation2 + $0x38] sm:$0xff]
    %v377 = vld [vmem:[#allocation2 + $0x40] sm:$0xff]
    %v378 = vld [vmem:[#allocation2 + $0x48] sm:$0xff]
    %v379 = vld [vmem:[#allocation2 + $0x50] sm:$0xff]
    %v380 = vld [vmem:[#allocation2 + $0x58] sm:$0xff]
    %v381 = vld [vmem:[#allocation2 + $0x60] sm:$0xff]
    %v382 = vld [vmem:[#allocation2 + $0x68] sm:$0xff]
    %v383 = vld [vmem:[#allocation2 + $0x70] sm:$0xff]
    %v384 = vld [vmem:[#allocation2 + $0x78] sm:$0xff]
    %385 = vmatprep.subr.mxu0 0.0
    %386 = vmatpush1.msra.mxu0 %v369
    %387 = vmatprep.subr.mxu0 0.0
    %388 = vmatpush1.msra.mxu0 %v370
    %389 = vmatprep.subr.mxu0 0.0
    %390 = vmatpush1.msra.mxu0 %v371
    %391 = vmatprep.subr.mxu0 0.0
    %392 = vmatpush1.msra.mxu0 %v372
    %393 = vmatprep.subr.mxu0 0.0
    %394 = vmatpush1.msra.mxu0 %v373
    %395 = vmatprep.subr.mxu0 0.0
    %396 = vmatpush1.msra.mxu0 %v374
    %397 = vmatprep.subr.mxu0 0.0
    %398 = vmatpush1.msra.mxu0 %v375
    %399 = vmatprep.subr.mxu0 0.0
    %400 = vmatpush1.msra.mxu0 %v376
    %401 = vmatprep.subr.mxu0 0.0
    %402 = vmatpush1.msra.mxu0 %v377
    %403 = vmatprep.subr.mxu0 0.0
    %404 = vmatpush1.msra.mxu0 %v378
    %405 = vmatprep.subr.mxu0 0.0
    %406 = vmatpush1.msra.mxu0 %v379
    %407 = vmatprep.subr.mxu0 0.0
    %408 = vmatpush1.msra.mxu0 %v380
    %409 = vmatprep.subr.mxu0 0.0
    %410 = vmatpush1.msra.mxu0 %v381
    %411 = vmatprep.subr.mxu0 0.0
    %412 = vmatpush1.msra.mxu0 %v382
    %413 = vmatprep.subr.mxu0 0.0
    %414 = vmatpush1.msra.mxu0 %v383
    %415 = vmatprep.subr.mxu0 0.0
    %416 = vmatpush1.msra.mxu0 %v384
    %417 = vmatprep.subr.mxu0 0.0
    %418 = vmatpush1.msra.mxu0 0.0
    %419 = vmatprep.subr.mxu0 0.0
    %420 = vmatpush1.msra.mxu0 0.0
    %421 = vmatprep.subr.mxu0 0.0
    %422 = vmatpush1.msra.mxu0 0.0
    %423 = vmatprep.subr.mxu0 0.0
    %424 = vmatpush1.msra.mxu0 0.0
    %425 = vmatprep.subr.mxu0 0.0
    %426 = vmatpush1.msra.mxu0 0.0
    %427 = vmatprep.subr.mxu0 0.0
    %428 = vmatpush1.msra.mxu0 0.0
    %429 = vmatprep.subr.mxu0 0.0
    %430 = vmatpush1.msra.mxu0 0.0
    %431 = vmatprep.subr.mxu0 0.0
    %432 = vmatpush1.msra.mxu0 0.0
    %433 = vmatprep.subr.mxu0 0.0
    %434 = vmatpush1.msra.mxu0 0.0
    %435 = vmatprep.subr.mxu0 0.0
    %436 = vmatpush1.msra.mxu0 0.0
    %437 = vmatprep.subr.mxu0 0.0
    %438 = vmatpush1.msra.mxu0 0.0
    %439 = vmatprep.subr.mxu0 0.0
    %440 = vmatpush1.msra.mxu0 0.0
    %441 = vmatprep.subr.mxu0 0.0
    %442 = vmatpush1.msra.mxu0 0.0
    %443 = vmatprep.subr.mxu0 0.0
    %444 = vmatpush1.msra.mxu0 0.0
    %445 = vmatprep.subr.mxu0 0.0
    %446 = vmatpush1.msra.mxu0 0.0
    %447 = vmatprep.subr.mxu0 0.0
    %448 = vmatpush1.msra.mxu0 0.0
    %449 = vmatprep.mubr.f32.mxu0 0.0
    %450 = vmatmul.mubr.f32.gmra.mrb[0].mxu0 %v367
    %v451 = vpop.f32.mrb[0].mxu0
    %v452 = vadd.f32 0.0, %v451
    %v453 = vpop.f32.mrb[0].mxu0
    %454 = vmatprep.mubr.f32.mxu0 0.0
    %455 = vmatmul.mubr.f32.gmra.mrb[0].mxu0 %v368
    %v456 = vpop.f32.mrb[0].mxu0
    %v457 = vadd.f32 0.0, %v456
    %v458 = vpop.f32.mrb[0].mxu0
    %459 = vdwg.mxu0
    %v460 = vld [vmem:[%s5] sm:$0x1]
    %v462 = vlaneseq
    %v463 = vshrl.u32 %v462, 7
    %v464 = vsub.s32 0, %v463
    %v465 = vrot.slane %v460, %v464
    %v467 = vadd.f32 %v452, %v465
    %v468 = vadd.f32 %v457, %v465
    %v469 = vrot.slane %v367, 4
    %v470 = vadd.f32 %v367, %v469
    %v471 = vrot.slane %v470, 2
    %v472 = vadd.f32 %v470, %v471
    %v473 = vrot.slane %v472, 1
    %v474 = vadd.f32 %v472, %v473
    %v475 = vrot.slane %v368, 4
    %v476 = vadd.f32 %v368, %v475
    %v477 = vrot.slane %v476, 2
    %v478 = vadd.f32 %v476, %v477
    %v479 = vrot.slane %v478, 1
    %v480 = vadd.f32 %v478, %v479
    %v481 = vld [vmem:[#allocation5] sm:$0xff]
    %v482 = vld [vmem:[#allocation5 + $0x8] sm:$0xff]
    %v483 = vld [vmem:[#allocation5 + $0x10] sm:$0xff]
    %v484 = vld [vmem:[#allocation5 + $0x18] sm:$0xff]
    %v485 = vld [vmem:[#allocation5 + $0x20] sm:$0xff]
    %v486 = vld [vmem:[#allocation5 + $0x28] sm:$0xff]
    %v487 = vld [vmem:[#allocation5 + $0x30] sm:$0xff]
    %v488 = vld [vmem:[#allocation5 + $0x38] sm:$0xff]
    %v489 = vld [vmem:[#allocation5 + $0x40] sm:$0xff]
    %v490 = vld [vmem:[#allocation5 + $0x48] sm:$0xff]
    %v491 = vld [vmem:[#allocation5 + $0x50] sm:$0xff]
    %v492 = vld [vmem:[#allocation5 + $0x58] sm:$0xff]
    %v493 = vld [vmem:[#allocation5 + $0x60] sm:$0xff]
    %v494 = vld [vmem:[#allocation5 + $0x68] sm:$0xff]
    %v495 = vld [vmem:[#allocation5 + $0x70] sm:$0xff]
    %v496 = vld [vmem:[#allocation5 + $0x78] sm:$0xff]
    %v499 = vsel %vm245, %v480, %v474
    %501 = vmatprep.subr.mxu0 0.0
    %502 = vmatpush1.msra.mxu0 %v481
    %503 = vmatprep.subr.mxu0 0.0
    %504 = vmatpush1.msra.mxu0 %v482
    %505 = vmatprep.subr.mxu0 0.0
    %506 = vmatpush1.msra.mxu0 %v483
    %507 = vmatprep.subr.mxu0 0.0
    %508 = vmatpush1.msra.mxu0 %v484
    %509 = vmatprep.subr.mxu0 0.0
    %510 = vmatpush1.msra.mxu0 %v485
    %511 = vmatprep.subr.mxu0 0.0
    %512 = vmatpush1.msra.mxu0 %v486
    %513 = vmatprep.subr.mxu0 0.0
    %514 = vmatpush1.msra.mxu0 %v487
    %515 = vmatprep.subr.mxu0 0.0
    %516 = vmatpush1.msra.mxu0 %v488
    %517 = vmatprep.subr.mxu0 0.0
    %518 = vmatpush1.msra.mxu0 %v489
    %519 = vmatprep.subr.mxu0 0.0
    %520 = vmatpush1.msra.mxu0 %v490
    %521 = vmatprep.subr.mxu0 0.0
    %522 = vmatpush1.msra.mxu0 %v491
    %523 = vmatprep.subr.mxu0 0.0
    %524 = vmatpush1.msra.mxu0 %v492
    %525 = vmatprep.subr.mxu0 0.0
    %526 = vmatpush1.msra.mxu0 %v493
    %527 = vmatprep.subr.mxu0 0.0
    %528 = vmatpush1.msra.mxu0 %v494
    %529 = vmatprep.subr.mxu0 0.0
    %530 = vmatpush1.msra.mxu0 %v495
    %531 = vmatprep.subr.mxu0 0.0
    %532 = vmatpush1.msra.mxu0 %v496
    %533 = vmatprep.subr.mxu0 0.0
    %534 = vmatpush1.msra.mxu0 0.0
    %535 = vmatprep.subr.mxu0 0.0
    %536 = vmatpush1.msra.mxu0 0.0
    %537 = vmatprep.subr.mxu0 0.0
    %538 = vmatpush1.msra.mxu0 0.0
    %539 = vmatprep.subr.mxu0 0.0
    %540 = vmatpush1.msra.mxu0 0.0
    %541 = vmatprep.subr.mxu0 0.0
    %542 = vmatpush1.msra.mxu0 0.0
    %543 = vmatprep.subr.mxu0 0.0
    %544 = vmatpush1.msra.mxu0 0.0
    %545 = vmatprep.subr.mxu0 0.0
    %546 = vmatpush1.msra.mxu0 0.0
    %547 = vmatprep.subr.mxu0 0.0
    %548 = vmatpush1.msra.mxu0 0.0
    %549 = vmatprep.subr.mxu0 0.0
    %550 = vmatpush1.msra.mxu0 0.0
    %551 = vmatprep.subr.mxu0 0.0
    %552 = vmatpush1.msra.mxu0 0.0
    %553 = vmatprep.subr.mxu0 0.0
    %554 = vmatpush1.msra.mxu0 0.0
    %555 = vmatprep.subr.mxu0 0.0
    %556 = vmatpush1.msra.mxu0 0.0
    %557 = vmatprep.subr.mxu0 0.0
    %558 = vmatpush1.msra.mxu0 0.0
    %559 = vmatprep.subr.mxu0 0.0
    %560 = vmatpush1.msra.mxu0 0.0
    %561 = vmatprep.subr.mxu0 0.0
    %562 = vmatpush1.msra.mxu0 0.0
    %563 = vmatprep.subr.mxu0 0.0
    %564 = vmatpush1.msra.mxu0 0.0
    %565 = vmatprep.mubr.f32.mxu0 0.0
    %566 = vmatmul.mubr.f32.gmra.mrb[0].mxu0 %v499
    %v567 = vpop.f32.mrb[0].mxu0
    %v568 = vadd.f32 0.0, %v567
    %v569 = vpop.f32.mrb[0].mxu0
    %570 = vdwg.mxu0
    %v573 = vunpack.c.l.s4 1966171168
    %v574 = vunpack.c.0.s8 %v573
    %v575 = vlaneseq
    %v576 = vshrl.u32 %v575, 7
    %v577 = vsub.s32 %v574, %v576
    %v578 = vrot.slane %v568, %v577
    %v579 = vcombine.high %v578, %v578
    %v581 = vunpack.c.l.s4 1966171168
    %v582 = vunpack.c.0.s8 %v581
    %v583 = vlaneseq
    %v584 = vshrl.u32 %v583, 7
    %v585 = vsub.s32 %v582, %v584
    %v586 = vrot.slane %v578, %v585
    %v588 = vunpack.c.l.s4 1966171168
    %v589 = vunpack.c.0.s8 %v588
    %v590 = vlaneseq
    %v591 = vshrl.u32 %v590, 7
    %v592 = vsub.s32 %v589, %v591
    %v593 = vrot.slane %v579, %v592
    %v594 = vlaneseq
    %v595 = vshrl.u32 %v594, 7
    %v596 = vsub.s32 0, %v595
    %v597 = vrot.slane %v586, %v596
    %v598 = vlaneseq
    %v599 = vshrl.u32 %v598, 7
    %v600 = vsub.s32 0, %v599
    %v601 = vrot.slane %v593, %v600
    %v604 = vsub.f32 %v467, %v597
    %v605 = vsub.f32 %v468, %v601
    %vm606 = vcmp.gt.f32.partialorder %v604, 0.0
    %vm607 = vcmp.gt.f32.partialorder %v605, 0.0
    %v608 = vmin.f32 %v604, 0.0
    %v609 = vmin.f32 %v605, 0.0
    %v610 = vmul.f32 %v608, 1.442695
    %v611 = vpow.pop %v610
    %v612 = vmul.f32 %v609, 1.442695
    %v613 = vpow.pop %v612
    %v614 = vsub.f32 %v611, 1.0
    %v615 = vsub.f32 %v613, 1.0
    %v616 = vsel %vm606, %v604, %v614
    %v617 = vsel %vm607, %v605, %v615
    %v618 = vld [vmem:[#allocation7] sm:$0xff]
    %v619 = vld [vmem:[#allocation7 + $0x8] sm:$0xff]
    %v620 = vld [vmem:[#allocation7 + $0x10] sm:$0xff]
    %v621 = vld [vmem:[#allocation7 + $0x18] sm:$0xff]
    %v622 = vld [vmem:[#allocation7 + $0x20] sm:$0xff]
    %v623 = vld [vmem:[#allocation7 + $0x28] sm:$0xff]
    %v624 = vld [vmem:[#allocation7 + $0x30] sm:$0xff]
    %v625 = vld [vmem:[#allocation7 + $0x38] sm:$0xff]
    %v626 = vld [vmem:[#allocation7 + $0x40] sm:$0xff]
    %v627 = vld [vmem:[#allocation7 + $0x48] sm:$0xff]
    %v628 = vld [vmem:[#allocation7 + $0x50] sm:$0xff]
    %v629 = vld [vmem:[#allocation7 + $0x58] sm:$0xff]
    %v630 = vld [vmem:[#allocation7 + $0x60] sm:$0xff]
    %v631 = vld [vmem:[#allocation7 + $0x68] sm:$0xff]
    %v632 = vld [vmem:[#allocation7 + $0x70] sm:$0xff]
    %v633 = vld [vmem:[#allocation7 + $0x78] sm:$0xff]
    %634 = vmatprep.subr.mxu0 0.0
    %635 = vmatpush1.msra.mxu0 %v618
    %636 = vmatprep.subr.mxu0 0.0
    %637 = vmatpush1.msra.mxu0 %v619
    %638 = vmatprep.subr.mxu0 0.0
    %639 = vmatpush1.msra.mxu0 %v620
    %640 = vmatprep.subr.mxu0 0.0
    %641 = vmatpush1.msra.mxu0 %v621
    %642 = vmatprep.subr.mxu0 0.0
    %643 = vmatpush1.msra.mxu0 %v622
    %644 = vmatprep.subr.mxu0 0.0
    %645 = vmatpush1.msra.mxu0 %v623
    %646 = vmatprep.subr.mxu0 0.0
    %647 = vmatpush1.msra.mxu0 %v624
    %648 = vmatprep.subr.mxu0 0.0
    %649 = vmatpush1.msra.mxu0 %v625
    %650 = vmatprep.subr.mxu0 0.0
    %651 = vmatpush1.msra.mxu0 %v626
    %652 = vmatprep.subr.mxu0 0.0
    %653 = vmatpush1.msra.mxu0 %v627
    %654 = vmatprep.subr.mxu0 0.0
    %655 = vmatpush1.msra.mxu0 %v628
    %656 = vmatprep.subr.mxu0 0.0
    %657 = vmatpush1.msra.mxu0 %v629
    %658 = vmatprep.subr.mxu0 0.0
    %659 = vmatpush1.msra.mxu0 %v630
    %660 = vmatprep.subr.mxu0 0.0
    %661 = vmatpush1.msra.mxu0 %v631
    %662 = vmatprep.subr.mxu0 0.0
    %663 = vmatpush1.msra.mxu0 %v632
    %664 = vmatprep.subr.mxu0 0.0
    %665 = vmatpush1.msra.mxu0 %v633
    %666 = vmatprep.subr.mxu0 0.0
    %667 = vmatpush1.msra.mxu0 0.0
    %668 = vmatprep.subr.mxu0 0.0
    %669 = vmatpush1.msra.mxu0 0.0
    %670 = vmatprep.subr.mxu0 0.0
    %671 = vmatpush1.msra.mxu0 0.0
    %672 = vmatprep.subr.mxu0 0.0
    %673 = vmatpush1.msra.mxu0 0.0
    %674 = vmatprep.subr.mxu0 0.0
    %675 = vmatpush1.msra.mxu0 0.0
    %676 = vmatprep.subr.mxu0 0.0
    %677 = vmatpush1.msra.mxu0 0.0
    %678 = vmatprep.subr.mxu0 0.0
    %679 = vmatpush1.msra.mxu0 0.0
    %680 = vmatprep.subr.mxu0 0.0
    %681 = vmatpush1.msra.mxu0 0.0
    %682 = vmatprep.subr.mxu0 0.0
    %683 = vmatpush1.msra.mxu0 0.0
    %684 = vmatprep.subr.mxu0 0.0
    %685 = vmatpush1.msra.mxu0 0.0
    %686 = vmatprep.subr.mxu0 0.0
    %687 = vmatpush1.msra.mxu0 0.0
    %688 = vmatprep.subr.mxu0 0.0
    %689 = vmatpush1.msra.mxu0 0.0
    %690 = vmatprep.subr.mxu0 0.0
    %691 = vmatpush1.msra.mxu0 0.0
    %692 = vmatprep.subr.mxu0 0.0
    %693 = vmatpush1.msra.mxu0 0.0
    %694 = vmatprep.subr.mxu0 0.0
    %695 = vmatpush1.msra.mxu0 0.0
    %696 = vmatprep.subr.mxu0 0.0
    %697 = vmatpush1.msra.mxu0 0.0
    %698 = vmatprep.mubr.f32.mxu0 0.0
    %699 = vmatmul.mubr.f32.gmra.mrb[0].mxu0 %v616
    %v700 = vpop.f32.mrb[0].mxu0
    %v701 = vadd.f32 0.0, %v700
    %v702 = vpop.f32.mrb[0].mxu0
    %703 = vmatprep.mubr.f32.mxu0 0.0
    %704 = vmatmul.mubr.f32.gmra.mrb[0].mxu0 %v617
    %v705 = vpop.f32.mrb[0].mxu0
    %v706 = vadd.f32 0.0, %v705
    %v707 = vpop.f32.mrb[0].mxu0
    %708 = vdwg.mxu0
    %v709 = vld [vmem:[%s8] sm:$0x1]
    %v711 = vlaneseq
    %v712 = vshrl.u32 %v711, 7
    %v713 = vsub.s32 0, %v712
    %v714 = vrot.slane %v709, %v713
    %v716 = vadd.f32 %v701, %v714
    %v717 = vadd.f32 %v706, %v714
    %v718 = vrot.slane %v616, 4
    %v719 = vadd.f32 %v616, %v718
    %v720 = vrot.slane %v719, 2
    %v721 = vadd.f32 %v719, %v720
    %v722 = vrot.slane %v721, 1
    %v723 = vadd.f32 %v721, %v722
    %v724 = vrot.slane %v617, 4
    %v725 = vadd.f32 %v617, %v724
    %v726 = vrot.slane %v725, 2
    %v727 = vadd.f32 %v725, %v726
    %v728 = vrot.slane %v727, 1
    %v729 = vadd.f32 %v727, %v728
    %v730 = vld [vmem:[#allocation8] sm:$0xff]
    %v731 = vld [vmem:[#allocation8 + $0x8] sm:$0xff]
    %v732 = vld [vmem:[#allocation8 + $0x10] sm:$0xff]
    %v733 = vld [vmem:[#allocation8 + $0x18] sm:$0xff]
    %v734 = vld [vmem:[#allocation8 + $0x20] sm:$0xff]
    %v735 = vld [vmem:[#allocation8 + $0x28] sm:$0xff]
    %v736 = vld [vmem:[#allocation8 + $0x30] sm:$0xff]
    %v737 = vld [vmem:[#allocation8 + $0x38] sm:$0xff]
    %v738 = vld [vmem:[#allocation8 + $0x40] sm:$0xff]
    %v739 = vld [vmem:[#allocation8 + $0x48] sm:$0xff]
    %v740 = vld [vmem:[#allocation8 + $0x50] sm:$0xff]
    %v741 = vld [vmem:[#allocation8 + $0x58] sm:$0xff]
    %v742 = vld [vmem:[#allocation8 + $0x60] sm:$0xff]
    %v743 = vld [vmem:[#allocation8 + $0x68] sm:$0xff]
    %v744 = vld [vmem:[#allocation8 + $0x70] sm:$0xff]
    %v745 = vld [vmem:[#allocation8 + $0x78] sm:$0xff]
    %v748 = vsel %vm245, %v729, %v723
    %750 = vmatprep.subr.mxu0 0.0
    %751 = vmatpush1.msra.mxu0 %v730
    %752 = vmatprep.subr.mxu0 0.0
    %753 = vmatpush1.msra.mxu0 %v731
    %754 = vmatprep.subr.mxu0 0.0
    %755 = vmatpush1.msra.mxu0 %v732
    %756 = vmatprep.subr.mxu0 0.0
    %757 = vmatpush1.msra.mxu0 %v733
    %758 = vmatprep.subr.mxu0 0.0
    %759 = vmatpush1.msra.mxu0 %v734
    %760 = vmatprep.subr.mxu0 0.0
    %761 = vmatpush1.msra.mxu0 %v735
    %762 = vmatprep.subr.mxu0 0.0
    %763 = vmatpush1.msra.mxu0 %v736
    %764 = vmatprep.subr.mxu0 0.0
    %765 = vmatpush1.msra.mxu0 %v737
    %766 = vmatprep.subr.mxu0 0.0
    %767 = vmatpush1.msra.mxu0 %v738
    %768 = vmatprep.subr.mxu0 0.0
    %769 = vmatpush1.msra.mxu0 %v739
    %770 = vmatprep.subr.mxu0 0.0
    %771 = vmatpush1.msra.mxu0 %v740
    %772 = vmatprep.subr.mxu0 0.0
    %773 = vmatpush1.msra.mxu0 %v741
    %774 = vmatprep.subr.mxu0 0.0
    %775 = vmatpush1.msra.mxu0 %v742
    %776 = vmatprep.subr.mxu0 0.0
    %777 = vmatpush1.msra.mxu0 %v743
    %778 = vmatprep.subr.mxu0 0.0
    %779 = vmatpush1.msra.mxu0 %v744
    %780 = vmatprep.subr.mxu0 0.0
    %781 = vmatpush1.msra.mxu0 %v745
    %782 = vmatprep.subr.mxu0 0.0
    %783 = vmatpush1.msra.mxu0 0.0
    %784 = vmatprep.subr.mxu0 0.0
    %785 = vmatpush1.msra.mxu0 0.0
    %786 = vmatprep.subr.mxu0 0.0
    %787 = vmatpush1.msra.mxu0 0.0
    %788 = vmatprep.subr.mxu0 0.0
    %789 = vmatpush1.msra.mxu0 0.0
    %790 = vmatprep.subr.mxu0 0.0
    %791 = vmatpush1.msra.mxu0 0.0
    %792 = vmatprep.subr.mxu0 0.0
    %793 = vmatpush1.msra.mxu0 0.0
    %794 = vmatprep.subr.mxu0 0.0
    %795 = vmatpush1.msra.mxu0 0.0
    %796 = vmatprep.subr.mxu0 0.0
    %797 = vmatpush1.msra.mxu0 0.0
    %798 = vmatprep.subr.mxu0 0.0
    %799 = vmatpush1.msra.mxu0 0.0
    %800 = vmatprep.subr.mxu0 0.0
    %801 = vmatpush1.msra.mxu0 0.0
    %802 = vmatprep.subr.mxu0 0.0
    %803 = vmatpush1.msra.mxu0 0.0
    %804 = vmatprep.subr.mxu0 0.0
    %805 = vmatpush1.msra.mxu0 0.0
    %806 = vmatprep.subr.mxu0 0.0
    %807 = vmatpush1.msra.mxu0 0.0
    %808 = vmatprep.subr.mxu0 0.0
    %809 = vmatpush1.msra.mxu0 0.0
    %810 = vmatprep.subr.mxu0 0.0
    %811 = vmatpush1.msra.mxu0 0.0
    %812 = vmatprep.subr.mxu0 0.0
    %813 = vmatpush1.msra.mxu0 0.0
    %814 = vmatprep.mubr.f32.mxu0 0.0
    %815 = vmatmul.mubr.f32.gmra.mrb[0].mxu0 %v748
    %v816 = vpop.f32.mrb[0].mxu0
    %v817 = vadd.f32 0.0, %v816
    %v818 = vpop.f32.mrb[0].mxu0
    %819 = vdwg.mxu0
    %v822 = vunpack.c.l.s4 1966171168
    %v823 = vunpack.c.0.s8 %v822
    %v824 = vlaneseq
    %v825 = vshrl.u32 %v824, 7
    %v826 = vsub.s32 %v823, %v825
    %v827 = vrot.slane %v817, %v826
    %v828 = vcombine.high %v827, %v827
    %v830 = vunpack.c.l.s4 1966171168
    %v831 = vunpack.c.0.s8 %v830
    %v832 = vlaneseq
    %v833 = vshrl.u32 %v832, 7
    %v834 = vsub.s32 %v831, %v833
    %v835 = vrot.slane %v827, %v834
    %v837 = vunpack.c.l.s4 1966171168
    %v838 = vunpack.c.0.s8 %v837
    %v839 = vlaneseq
    %v840 = vshrl.u32 %v839, 7
    %v841 = vsub.s32 %v838, %v840
    %v842 = vrot.slane %v828, %v841
    %v843 = vlaneseq
    %v844 = vshrl.u32 %v843, 7
    %v845 = vsub.s32 0, %v844
    %v846 = vrot.slane %v835, %v845
    %v847 = vlaneseq
    %v848 = vshrl.u32 %v847, 7
    %v849 = vsub.s32 0, %v848
    %v850 = vrot.slane %v842, %v849
    %v853 = vsub.f32 %v716, %v846
    %v854 = vsub.f32 %v717, %v850
    %vm855 = vcmp.gt.f32.partialorder %v853, 0.0
    %vm856 = vcmp.gt.f32.partialorder %v854, 0.0
    %v857 = vmin.f32 %v853, 0.0
    %v858 = vmin.f32 %v854, 0.0
    %v859 = vmul.f32 %v857, 1.442695
    %v860 = vpow.pop %v859
    %v861 = vmul.f32 %v858, 1.442695
    %v862 = vpow.pop %v861
    %v863 = vsub.f32 %v860, 1.0
    %v864 = vsub.f32 %v862, 1.0
    %v865 = vsel %vm855, %v853, %v863
    %v866 = vsel %vm856, %v854, %v864
    %v867 = vrot.slane %v865, 4
    %v868 = vadd.f32 %v865, %v867
    %v869 = vrot.slane %v868, 2
    %v870 = vadd.f32 %v868, %v869
    %v871 = vrot.slane %v870, 1
    %v872 = vadd.f32 %v870, %v871
    %v873 = vrot.slane %v866, 4
    %v874 = vadd.f32 %v866, %v873
    %v875 = vrot.slane %v874, 2
    %v876 = vadd.f32 %v874, %v875
    %v877 = vrot.slane %v876, 1
    %v878 = vadd.f32 %v876, %v877
    %v879 = vrcp.pop 8.0
    %v880 = vmul.f32 %v872, %v879
    %v881 = vmul.f32 %v878, %v879
    %v882 = vld [vmem:[#allocation10] sm:$0xff]
    %v883 = vld [vmem:[#allocation10 + $0x8] sm:$0xff]
    %v884 = vld [vmem:[#allocation10 + $0x10] sm:$0xff]
    %v885 = vld [vmem:[#allocation10 + $0x18] sm:$0xff]
    %v886 = vld [vmem:[#allocation10 + $0x20] sm:$0xff]
    %v887 = vld [vmem:[#allocation10 + $0x28] sm:$0xff]
    %v888 = vld [vmem:[#allocation10 + $0x30] sm:$0xff]
    %v889 = vld [vmem:[#allocation10 + $0x38] sm:$0xff]
    %v890 = vld [vmem:[#allocation10 + $0x40] sm:$0xff]
    %v891 = vld [vmem:[#allocation10 + $0x48] sm:$0xff]
    %v892 = vld [vmem:[#allocation10 + $0x50] sm:$0xff]
    %v893 = vld [vmem:[#allocation10 + $0x58] sm:$0xff]
    %v894 = vld [vmem:[#allocation10 + $0x60] sm:$0xff]
    %v895 = vld [vmem:[#allocation10 + $0x68] sm:$0xff]
    %v896 = vld [vmem:[#allocation10 + $0x70] sm:$0xff]
    %v897 = vld [vmem:[#allocation10 + $0x78] sm:$0xff]
    %v898 = vld [vmem:[%s11] sm:$0x1]
    %v900 = vlaneseq
    %v901 = vshrl.u32 %v900, 7
    %v902 = vsub.s32 0, %v901
    %v903 = vrot.slane %v898, %v902
    %v907 = vsel %vm245, %v881, %v880
    %909 = vmatprep.subr.mxu0 0.0
    %910 = vmatpush1.msra.mxu0 %v882
    %911 = vmatprep.subr.mxu0 0.0
    %912 = vmatpush1.msra.mxu0 %v883
    %913 = vmatprep.subr.mxu0 0.0
    %914 = vmatpush1.msra.mxu0 %v884
    %915 = vmatprep.subr.mxu0 0.0
    %916 = vmatpush1.msra.mxu0 %v885
    %917 = vmatprep.subr.mxu0 0.0
    %918 = vmatpush1.msra.mxu0 %v886
    %919 = vmatprep.subr.mxu0 0.0
    %920 = vmatpush1.msra.mxu0 %v887
    %921 = vmatprep.subr.mxu0 0.0
    %922 = vmatpush1.msra.mxu0 %v888
    %923 = vmatprep.subr.mxu0 0.0
    %924 = vmatpush1.msra.mxu0 %v889
    %925 = vmatprep.subr.mxu0 0.0
    %926 = vmatpush1.msra.mxu0 %v890
    %927 = vmatprep.subr.mxu0 0.0
    %928 = vmatpush1.msra.mxu0 %v891
    %929 = vmatprep.subr.mxu0 0.0
    %930 = vmatpush1.msra.mxu0 %v892
    %931 = vmatprep.subr.mxu0 0.0
    %932 = vmatpush1.msra.mxu0 %v893
    %933 = vmatprep.subr.mxu0 0.0
    %934 = vmatpush1.msra.mxu0 %v894
    %935 = vmatprep.subr.mxu0 0.0
    %936 = vmatpush1.msra.mxu0 %v895
    %937 = vmatprep.subr.mxu0 0.0
    %938 = vmatpush1.msra.mxu0 %v896
    %939 = vmatprep.subr.mxu0 0.0
    %940 = vmatpush1.msra.mxu0 %v897
    %941 = vmatprep.subr.mxu0 0.0
    %942 = vmatpush1.msra.mxu0 0.0
    %943 = vmatprep.subr.mxu0 0.0
    %944 = vmatpush1.msra.mxu0 0.0
    %945 = vmatprep.subr.mxu0 0.0
    %946 = vmatpush1.msra.mxu0 0.0
    %947 = vmatprep.subr.mxu0 0.0
    %948 = vmatpush1.msra.mxu0 0.0
    %949 = vmatprep.subr.mxu0 0.0
    %950 = vmatpush1.msra.mxu0 0.0
    %951 = vmatprep.subr.mxu0 0.0
    %952 = vmatpush1.msra.mxu0 0.0
    %953 = vmatprep.subr.mxu0 0.0
    %954 = vmatpush1.msra.mxu0 0.0
    %955 = vmatprep.subr.mxu0 0.0
    %956 = vmatpush1.msra.mxu0 0.0
    %957 = vmatprep.subr.mxu0 0.0
    %958 = vmatpush1.msra.mxu0 0.0
    %959 = vmatprep.subr.mxu0 0.0
    %960 = vmatpush1.msra.mxu0 0.0
    %961 = vmatprep.subr.mxu0 0.0
    %962 = vmatpush1.msra.mxu0 0.0
    %963 = vmatprep.subr.mxu0 0.0
    %964 = vmatpush1.msra.mxu0 0.0
    %965 = vmatprep.subr.mxu0 0.0
    %966 = vmatpush1.msra.mxu0 0.0
    %967 = vmatprep.subr.mxu0 0.0
    %968 = vmatpush1.msra.mxu0 0.0
    %969 = vmatprep.subr.mxu0 0.0
    %970 = vmatpush1.msra.mxu0 0.0
    %971 = vmatprep.subr.mxu0 0.0
    %972 = vmatpush1.msra.mxu0 0.0
    %973 = vmatprep.mubr.f32.mxu0 0.0
    %974 = vmatmul.mubr.f32.gmra.mrb[0].mxu0 %v907
    %v975 = vpop.f32.mrb[0].mxu0
    %v976 = vadd.f32 %v903, %v975
    %v977 = vpop.f32.mrb[0].mxu0
    %978 = vdwg.mxu0
    %vm979 = vcmp.gt.f32.partialorder %v976, 0.0
    %v980 = vmin.f32 %v976, 0.0
    %v981 = vmul.f32 %v980, 1.442695
    %v982 = vpow.pop %v981
    %v983 = vsub.f32 %v982, 1.0
    %v984 = vsel %vm979, %v976, %v983
    %v985 = vld [vmem:[#allocation11] sm:$0xff]
    %v986 = vld [vmem:[#allocation11 + $0x8] sm:$0xff]
    %v987 = vld [vmem:[#allocation11 + $0x10] sm:$0xff]
    %v988 = vld [vmem:[#allocation11 + $0x18] sm:$0xff]
    %v989 = vld [vmem:[#allocation11 + $0x20] sm:$0xff]
    %v990 = vld [vmem:[#allocation11 + $0x28] sm:$0xff]
    %v991 = vld [vmem:[#allocation11 + $0x30] sm:$0xff]
    %v992 = vld [vmem:[#allocation11 + $0x38] sm:$0xff]
    %v993 = vld [vmem:[#allocation11 + $0x40] sm:$0xff]
    %v994 = vld [vmem:[#allocation11 + $0x48] sm:$0xff]
    %v995 = vld [vmem:[#allocation11 + $0x50] sm:$0xff]
    %v996 = vld [vmem:[#allocation11 + $0x58] sm:$0xff]
    %v997 = vld [vmem:[#allocation11 + $0x60] sm:$0xff]
    %v998 = vld [vmem:[#allocation11 + $0x68] sm:$0xff]
    %v999 = vld [vmem:[#allocation11 + $0x70] sm:$0xff]
    %v1000 = vld [vmem:[#allocation11 + $0x78] sm:$0xff]
    %v1001 = vld [vmem:[%s13] sm:$0x1]
    %v1003 = vlaneseq
    %v1004 = vshrl.u32 %v1003, 7
    %v1005 = vsub.s32 0, %v1004
    %v1006 = vrot.slane %v1001, %v1005
    %1008 = vmatprep.subr.mxu0 0.0
    %1009 = vmatpush1.msra.mxu0 %v985
    %1010 = vmatprep.subr.mxu0 0.0
    %1011 = vmatpush1.msra.mxu0 %v986
    %1012 = vmatprep.subr.mxu0 0.0
    %1013 = vmatpush1.msra.mxu0 %v987
    %1014 = vmatprep.subr.mxu0 0.0
    %1015 = vmatpush1.msra.mxu0 %v988
    %1016 = vmatprep.subr.mxu0 0.0
    %1017 = vmatpush1.msra.mxu0 %v989
    %1018 = vmatprep.subr.mxu0 0.0
    %1019 = vmatpush1.msra.mxu0 %v990
    %1020 = vmatprep.subr.mxu0 0.0
    %1021 = vmatpush1.msra.mxu0 %v991
    %1022 = vmatprep.subr.mxu0 0.0
    %1023 = vmatpush1.msra.mxu0 %v992
    %1024 = vmatprep.subr.mxu0 0.0
    %1025 = vmatpush1.msra.mxu0 %v993
    %1026 = vmatprep.subr.mxu0 0.0
    %1027 = vmatpush1.msra.mxu0 %v994
    %1028 = vmatprep.subr.mxu0 0.0
    %1029 = vmatpush1.msra.mxu0 %v995
    %1030 = vmatprep.subr.mxu0 0.0
    %1031 = vmatpush1.msra.mxu0 %v996
    %1032 = vmatprep.subr.mxu0 0.0
    %1033 = vmatpush1.msra.mxu0 %v997
    %1034 = vmatprep.subr.mxu0 0.0
    %1035 = vmatpush1.msra.mxu0 %v998
    %1036 = vmatprep.subr.mxu0 0.0
    %1037 = vmatpush1.msra.mxu0 %v999
    %1038 = vmatprep.subr.mxu0 0.0
    %1039 = vmatpush1.msra.mxu0 %v1000
    %1040 = vmatprep.subr.mxu0 0.0
    %1041 = vmatpush1.msra.mxu0 0.0
    %1042 = vmatprep.subr.mxu0 0.0
    %1043 = vmatpush1.msra.mxu0 0.0
    %1044 = vmatprep.subr.mxu0 0.0
    %1045 = vmatpush1.msra.mxu0 0.0
    %1046 = vmatprep.subr.mxu0 0.0
    %1047 = vmatpush1.msra.mxu0 0.0
    %1048 = vmatprep.subr.mxu0 0.0
    %1049 = vmatpush1.msra.mxu0 0.0
    %1050 = vmatprep.subr.mxu0 0.0
    %1051 = vmatpush1.msra.mxu0 0.0
    %1052 = vmatprep.subr.mxu0 0.0
    %1053 = vmatpush1.msra.mxu0 0.0
    %1054 = vmatprep.subr.mxu0 0.0
    %1055 = vmatpush1.msra.mxu0 0.0
    %1056 = vmatprep.subr.mxu0 0.0
    %1057 = vmatpush1.msra.mxu0 0.0
    %1058 = vmatprep.subr.mxu0 0.0
    %1059 = vmatpush1.msra.mxu0 0.0
    %1060 = vmatprep.subr.mxu0 0.0
    %1061 = vmatpush1.msra.mxu0 0.0
    %1062 = vmatprep.subr.mxu0 0.0
    %1063 = vmatpush1.msra.mxu0 0.0
    %1064 = vmatprep.subr.mxu0 0.0
    %1065 = vmatpush1.msra.mxu0 0.0
    %1066 = vmatprep.subr.mxu0 0.0
    %1067 = vmatpush1.msra.mxu0 0.0
    %1068 = vmatprep.subr.mxu0 0.0
    %1069 = vmatpush1.msra.mxu0 0.0
    %1070 = vmatprep.subr.mxu0 0.0
    %1071 = vmatpush1.msra.mxu0 0.0
    %1072 = vmatprep.mubr.f32.mxu0 0.0
    %1073 = vmatmul.mubr.f32.gmra.mrb[0].mxu0 %v984
    %v1074 = vpop.f32.mrb[0].mxu0
    %v1075 = vadd.f32 %v1006, %v1074
    %v1076 = vpop.f32.mrb[0].mxu0
    %1077 = vdwg.mxu0
    %1078 = vst [vmem:[#allocation13] sm:$0x3] %v1075
    // Predicated region
    $region82: #{tpu_custom_call.1} parent=1 // pred_check
      _
    $region83: #{tpu_custom_call.1} parent=1 // pred_check_branch
      %1080 = sbr.rel (0) target = $region85
    $region84: #{tpu_custom_call.1} parent=1 // pred_region
      %s1082 = ssub.s32 32, 32
      %1083 = vsyncadd [#allocation4], %s1082
      %s1085 = sshll.u32 [#allocation13], 4
      %s1086 = int_to_ptr.vmem [resolvable:$true] %s1085
      %1088 = dma.vmem_to_hbm [thread:$0]  %s1086, 32, %s14, [#allocation4]
    $region85: #{tpu_custom_call.1} parent=1 // pred_fallthru
      _
    // Predicated region
    $region86: #{tpu_custom_call.1} parent=1 // pred_check
      _
    $region87: #{tpu_custom_call.1} parent=1 // pred_check_branch
      %1090 = sbr.rel (0) target = $region89
    $region88: #{tpu_custom_call.1} parent=1 // pred_region
      %1091 = dma.done [#allocation4], 32
    $region89: #{tpu_custom_call.1} parent=1 // pred_fallthru
      _
    %1092 = vsyncpa [#allocation3], 1
    %1093 = vsyncpa [#allocation6], 1
    %1094 = vsyncpa [#allocation9], 1
    %1095 = vsyncpa [#allocation12], 1
    %1096 = vsyncpa [#allocation4], 1

</llo_original>
